<compile_context>
chip_gen: v7x
topology: tpu7x:2x2x1
jax: 0.10.0
libtpu: 0.0.40
codegen_flags: <defaults>
</compile_context>

<pallas_src>
import math
import functools

import jax
import jax.numpy as jnp
from jax.experimental import pallas as pl
from jax.experimental.pallas import tpu as pltpu


def _mha_kernel(q_ref, k_ref, v_ref,
                wq_ref, wk_ref, wv_ref, wo_ref,
                bq_ref, bk_ref, bv_ref, bo_ref,
                o_ref, *, head_num, block_batch, seq_len):
    """One grid step = `block_batch` batch elements.

    Activation refs are (rows, F) with rows = block_batch * seq_len.
    Weights arrive as bf16 (F, F) in x @ W layout (1/sqrt(d) folded into Wq);
    biases are f32 (1, F).
    """
    H, NB, S = head_num, block_batch, seq_len
    rows, F = q_ref.shape
    d = F // H
    assert rows == NB * S

    def proj(x_ref, w_ref, b_ref):
        # Single (rows, F) @ (F, F) MXU matmul; bf16 operands, f32 accumulation.
        p = jnp.dot(x_ref[...].astype(jnp.bfloat16), w_ref[...],
                    preferred_element_type=jnp.float32)
        return jnp.maximum(p + b_ref[...], 0.0)            # (rows, F) f32

    qp = proj(q_ref, wq_ref, bq_ref)   # already scaled by 1/sqrt(d)
    kp = proj(k_ref, wk_ref, bk_ref)
    vp = proj(v_ref, wv_ref, bv_ref)

    def to_heads(x2d):
        # (rows, F) -> (NB, S, F) -> head-batched (H*NB, S, d).
        # Static lane slices at multiples of d + concat along the untiled
        # leading axis (head-major ordering; split/merge kept consistent).
        x3 = x2d.reshape(NB, S, F)
        parts = [x3[:, :, h * d:(h + 1) * d] for h in range(H)]
        return jnp.concatenate(parts, axis=0).astype(jnp.bfloat16)

    qh = to_heads(qp)                  # (H*NB, S, d) bf16
    kh = to_heads(kp)
    vh = to_heads(vp)

    # TODO(synk): optional attention mask (mask != None path) not implemented.
    s = jnp.einsum('bqd,bkd->bqk', qh, kh,
                   preferred_element_type=jnp.float32)      # (H*NB, S, S) f32
    s = s - jnp.max(s, axis=-1, keepdims=True)
    e = jnp.exp(s)
    p = e * pl.reciprocal(jnp.sum(e, axis=-1, keepdims=True), approx=True)

    y = jnp.einsum('bqk,bkd->bqd', p.astype(jnp.bfloat16), vh,
                   preferred_element_type=jnp.float32)      # (H*NB, S, d) f32

    # Merge heads back along lanes -> (rows, F), then ONE output matmul.
    y5 = y.reshape(H, NB, S, d)
    ym = jnp.concatenate([y5[h] for h in range(H)], axis=-1)   # (NB, S, F)
    ym2 = ym.reshape(rows, F).astype(jnp.bfloat16)

    out = jnp.dot(ym2, wo_ref[...], preferred_element_type=jnp.float32)
    out = jnp.maximum(out + bo_ref[...], 0.0)
    o_ref[...] = out.astype(o_ref.dtype)


def multi_head_attention(q, k, v, params, *, head_num, block_batch=None):
    """q, k, v: (B, S, F). params: transposed weights (F, F) and biases (1, F)."""
    B, S, F = q.shape
    assert F % head_num == 0
    d = F // head_num
    scale = 1.0 / math.sqrt(d)

    # Batch block: target ~256 projection rows per step (MXU occupancy on
    # v6e/v7x; v5e saturates at 128) while dividing B exactly.  At large B this
    # also leaves plenty of grid steps for pipelining / megacore sharding; at
    # tiny B (toy shapes) the bigger block wins over step count.
    if block_batch is None:
        target_rows = 256
        cap = max(1, min(B, target_rows // max(1, S)))
        block_batch = max(n for n in range(1, cap + 1) if B % n == 0)
    nb = block_batch
    assert B % nb == 0
    if (nb * S) % 8 != 0:          # keep the row block sublane (8) aligned
        nb = B
    steps = B // nb
    rows_blk = nb * S
    rows_total = B * S

    # MXU operands pre-cast to bf16; 1/sqrt(d) folded into Wq/bq (exact, since
    # ReLU is positive-homogeneous).  Biases stay f32 (added after f32 accum).
    wq = (params["wq_t"] * scale).astype(jnp.bfloat16)
    wk = params["wk_t"].astype(jnp.bfloat16)
    wv = params["wv_t"].astype(jnp.bfloat16)
    wo = params["wo_t"].astype(jnp.bfloat16)
    bq = (params["bq"] * scale).astype(jnp.float32)
    bk = params["bk"].astype(jnp.float32)
    bv = params["bv"].astype(jnp.float32)
    bo = params["bo"].astype(jnp.float32)

    # Present activations / output as contiguous (B*S, F) row slabs (free
    # metadata reshape in XLA; keeps the kernel's loads/stores row-dense).
    q2 = q.reshape(rows_total, F)
    k2 = k.reshape(rows_total, F)
    v2 = v.reshape(rows_total, F)

    kernel = functools.partial(_mha_kernel, head_num=head_num,
                               block_batch=nb, seq_len=S)

    act_spec = pl.BlockSpec((rows_blk, F), lambda i: (i, 0))
    w_spec = pl.BlockSpec((F, F), lambda i: (0, 0))
    b_spec = pl.BlockSpec((1, F), lambda i: (0, 0))

    # VMEM budget: double-buffered activation blocks + weights + f32
    # intermediates.  Raised above the v5e/v6e scoped defaults, capped at
    # 64 MiB so the same plan fits v7x physical VMEM.
    # TODO(synk): for very large S the (nb*H, S, S) score block would need a
    # KV-tiled online-softmax (flash) variant instead of full-S scores.
    act_bytes = rows_blk * F * 4
    est = (2 * 4 * act_bytes                          # double-buffered q/k/v/out
           + 2 * (4 * F * F * 2 + 4 * 8 * 128 * 4)    # weights + padded biases
           + 16 * act_bytes                           # f32 projections / head views
           + 8 * nb * head_num * S * S * 4)           # scores + softmax temps
    vmem_limit = int(min(64 * 1024 * 1024, max(32 * 1024 * 1024, 2 * est)))

    out2 = pl.pallas_call(
        kernel,
        out_shape=jax.ShapeDtypeStruct((rows_total, F), q.dtype),
        grid=(steps,),
        in_specs=[act_spec, act_spec, act_spec,
                  w_spec, w_spec, w_spec, w_spec,
                  b_spec, b_spec, b_spec, b_spec],
        out_specs=act_spec,
        compiler_params=pltpu.CompilerParams(
            dimension_semantics=("parallel",),   # batch-block axis -> megacore
            vmem_limit_bytes=vmem_limit),
    )(q2, k2, v2, wq, wk, wv, wo, bq, bk, bv, bo)
    return out2.reshape(B, S, F)


def _reference(q, k, v, params, *, head_num):
    """Pure-JAX f32 reference mirroring the PyTorch module (mask=None path)."""
    B, S, F = q.shape
    d = F // head_num

    def lin_relu(x, w_t, b):
        return jax.nn.relu(x @ w_t + b)

    qp = lin_relu(q, params["wq_t"], params["bq"])
    kp = lin_relu(k, params["wk_t"], params["bk"])
    vp = lin_relu(v, params["wv_t"], params["bv"])

    def to_batches(x):
        return x.reshape(B, S, head_num, d).transpose(0, 2, 1, 3).reshape(B * head_num, S, d)

    qh, kh, vh = to_batches(qp), to_batches(kp), to_batches(vp)
    scores = jnp.einsum("bqd,bkd->bqk", qh, kh) / math.sqrt(d)
    attn = jax.nn.softmax(scores, axis=-1)
    y = jnp.einsum("bqk,bkd->bqd", attn, vh)
    y = y.reshape(B, head_num, S, d).transpose(0, 2, 1, 3).reshape(B, S, F)
    return jax.nn.relu(y @ params["wo_t"] + params["bo"])


def init_params(key, in_features):
    """Weights ~ N(0, 0.1) like reset_parameters(); biases ~ U(-1/sqrt(F), 1/sqrt(F))."""
    keys = jax.random.split(key, 8)
    bound = 1.0 / math.sqrt(in_features)

    def w(k):  # stored pre-transposed: (in, out)
        return (0.1 * jax.random.normal(k, (in_features, in_features), jnp.float32)).T

    def b(k):
        return jax.random.uniform(k, (1, in_features), jnp.float32, -bound, bound)

    return {
        "wq_t": w(keys[0]), "bq": b(keys[1]),
        "wk_t": w(keys[2]), "bk": b(keys[3]),
        "wv_t": w(keys[4]), "bv": b(keys[5]),
        "wo_t": w(keys[6]), "bo": b(keys[7]),
    }


if __name__ == "__main__":
    B, S, F, H = 2, 8, 32, 4  # batch, seq, in_features, head_num

    key = jax.random.PRNGKey(0)
    kq, kk, kv, kp = jax.random.split(key, 4)
    q = jax.random.normal(kq, (B, S, F), jnp.float32)
    k = jax.random.normal(kk, (B, S, F), jnp.float32)
    v = jax.random.normal(kv, (B, S, F), jnp.float32)
    params = init_params(kp, F)

    out = multi_head_attention(q, k, v, params, head_num=H)
    out = jax.block_until_ready(out)

    ref = _reference(q, k, v, params, head_num=H)
    assert out.shape == (B, S, F)
    # Tolerance sized for bf16 MXU operands (f32 accumulation) plus the EUP
    # approximate-reciprocal softmax denominator.
    assert jnp.allclose(out, ref, atol=2e-2, rtol=2e-2), "mismatch vs pure-JAX reference"

    print("KERNEL_OK")
</pallas_src>

<mosaic_0001>
module attributes {stable_mosaic.version = 11 : i64} {
  func.func @_mha_kernel(%arg0: i32, %arg1: memref<16x32xf32, #tpu.memory_space<vmem>>, %arg2: memref<16x32xf32, #tpu.memory_space<vmem>>, %arg3: memref<16x32xf32, #tpu.memory_space<vmem>>, %arg4: memref<32x32xbf16, #tpu.memory_space<vmem>>, %arg5: memref<32x32xbf16, #tpu.memory_space<vmem>>, %arg6: memref<32x32xbf16, #tpu.memory_space<vmem>>, %arg7: memref<32x32xbf16, #tpu.memory_space<vmem>>, %arg8: memref<1x32xf32, #tpu.memory_space<vmem>>, %arg9: memref<1x32xf32, #tpu.memory_space<vmem>>, %arg10: memref<1x32xf32, #tpu.memory_space<vmem>>, %arg11: memref<1x32xf32, #tpu.memory_space<vmem>>, %arg12: memref<16x32xf32, #tpu.memory_space<vmem>>) attributes {dimension_semantics = [#tpu.dimension_semantics<parallel>], iteration_bounds = array<i64: 1>, scalar_prefetch = 0 : i64, scratch_operands = 0 : i64, tpu.core_type = #tpu.core_type<tc>, window_params = [{transform_indices = @transform_0, window_bounds = array<i64: 16, 32>}, {transform_indices = @transform_1, window_bounds = array<i64: 16, 32>}, {transform_indices = @transform_2, window_bounds = array<i64: 16, 32>}, {pipeline_mode = #tpu.pipeline_mode<synchronous>, transform_indices = @transform_3, window_bounds = array<i64: 32, 32>}, {pipeline_mode = #tpu.pipeline_mode<synchronous>, transform_indices = @transform_4, window_bounds = array<i64: 32, 32>}, {pipeline_mode = #tpu.pipeline_mode<synchronous>, transform_indices = @transform_5, window_bounds = array<i64: 32, 32>}, {pipeline_mode = #tpu.pipeline_mode<synchronous>, transform_indices = @transform_6, window_bounds = array<i64: 32, 32>}, {pipeline_mode = #tpu.pipeline_mode<synchronous>, transform_indices = @transform_7, window_bounds = array<i64: 1, 32>}, {pipeline_mode = #tpu.pipeline_mode<synchronous>, transform_indices = @transform_8, window_bounds = array<i64: 1, 32>}, {pipeline_mode = #tpu.pipeline_mode<synchronous>, transform_indices = @transform_9, window_bounds = array<i64: 1, 32>}, {pipeline_mode = #tpu.pipeline_mode<synchronous>, transform_indices = @transform_10, window_bounds = array<i64: 1, 32>}, {transform_indices = @transform_11, window_bounds = array<i64: 16, 32>}]} {
    %c0 = arith.constant 0 : index
    %c0_0 = arith.constant 0 : index
    %0 = vector.load %arg1[%c0, %c0_0] : memref<16x32xf32, #tpu.memory_space<vmem>>, vector<16x32xf32>
    %1 = arith.truncf %0 : vector<16x32xf32> to vector<16x32xbf16>
    %c0_1 = arith.constant 0 : index
    %c0_2 = arith.constant 0 : index
    %2 = vector.load %arg4[%c0_1, %c0_2] : memref<32x32xbf16, #tpu.memory_space<vmem>>, vector<32x32xbf16>
    %cst = arith.constant dense<0.000000e+00> : vector<16x32xf32>
    %3 = tpu.matmul %1, %2, %cst {dimension_numbers = #tpu.dot_dimension_numbers<[1], [0], [0], [1], [0, 0, 1, 1], [], []>} : vector<16x32xbf16>, vector<32x32xbf16>, vector<16x32xf32> -> vector<16x32xf32>
    %c0_3 = arith.constant 0 : index
    %c0_4 = arith.constant 0 : index
    %4 = vector.load %arg8[%c0_3, %c0_4] : memref<1x32xf32, #tpu.memory_space<vmem>>, vector<1x32xf32>
    %5 = vector.broadcast %4 : vector<1x32xf32> to vector<16x32xf32>
    %6 = arith.addf %3, %5 : vector<16x32xf32>
    %cst_5 = arith.constant 0.000000e+00 : f32
    %7 = vector.broadcast %cst_5 : f32 to vector<16x32xf32>
    %8 = arith.maximumf %6, %7 : vector<16x32xf32>
    %c0_6 = arith.constant 0 : index
    %c0_7 = arith.constant 0 : index
    %9 = vector.load %arg2[%c0_6, %c0_7] : memref<16x32xf32, #tpu.memory_space<vmem>>, vector<16x32xf32>
    %10 = arith.truncf %9 : vector<16x32xf32> to vector<16x32xbf16>
    %c0_8 = arith.constant 0 : index
    %c0_9 = arith.constant 0 : index
    %11 = vector.load %arg5[%c0_8, %c0_9] : memref<32x32xbf16, #tpu.memory_space<vmem>>, vector<32x32xbf16>
    %cst_10 = arith.constant dense<0.000000e+00> : vector<16x32xf32>
    %12 = tpu.matmul %10, %11, %cst_10 {dimension_numbers = #tpu.dot_dimension_numbers<[1], [0], [0], [1], [0, 0, 1, 1], [], []>} : vector<16x32xbf16>, vector<32x32xbf16>, vector<16x32xf32> -> vector<16x32xf32>
    %c0_11 = arith.constant 0 : index
    %c0_12 = arith.constant 0 : index
    %13 = vector.load %arg9[%c0_11, %c0_12] : memref<1x32xf32, #tpu.memory_space<vmem>>, vector<1x32xf32>
    %14 = vector.broadcast %13 : vector<1x32xf32> to vector<16x32xf32>
    %15 = arith.addf %12, %14 : vector<16x32xf32>
    %cst_13 = arith.constant 0.000000e+00 : f32
    %16 = vector.broadcast %cst_13 : f32 to vector<16x32xf32>
    %17 = arith.maximumf %15, %16 : vector<16x32xf32>
    %c0_14 = arith.constant 0 : index
    %c0_15 = arith.constant 0 : index
    %18 = vector.load %arg3[%c0_14, %c0_15] : memref<16x32xf32, #tpu.memory_space<vmem>>, vector<16x32xf32>
    %19 = arith.truncf %18 : vector<16x32xf32> to vector<16x32xbf16>
    %c0_16 = arith.constant 0 : index
    %c0_17 = arith.constant 0 : index
    %20 = vector.load %arg6[%c0_16, %c0_17] : memref<32x32xbf16, #tpu.memory_space<vmem>>, vector<32x32xbf16>
    %cst_18 = arith.constant dense<0.000000e+00> : vector<16x32xf32>
    %21 = tpu.matmul %19, %20, %cst_18 {dimension_numbers = #tpu.dot_dimension_numbers<[1], [0], [0], [1], [0, 0, 1, 1], [], []>} : vector<16x32xbf16>, vector<32x32xbf16>, vector<16x32xf32> -> vector<16x32xf32>
    %c0_19 = arith.constant 0 : index
    %c0_20 = arith.constant 0 : index
    %22 = vector.load %arg10[%c0_19, %c0_20] : memref<1x32xf32, #tpu.memory_space<vmem>>, vector<1x32xf32>
    %23 = vector.broadcast %22 : vector<1x32xf32> to vector<16x32xf32>
    %24 = arith.addf %21, %23 : vector<16x32xf32>
    %cst_21 = arith.constant 0.000000e+00 : f32
    %25 = vector.broadcast %cst_21 : f32 to vector<16x32xf32>
    %26 = arith.maximumf %24, %25 : vector<16x32xf32>
    %27 = vector.shape_cast %8 : vector<16x32xf32> to vector<2x8x32xf32>
    %28 = vector.extract_strided_slice %27 {offsets = [0, 0, 0], sizes = [2, 8, 8], strides = [1, 1, 1]} : vector<2x8x32xf32> to vector<2x8x8xf32>
    %29 = vector.extract_strided_slice %27 {offsets = [0, 0, 8], sizes = [2, 8, 8], strides = [1, 1, 1]} : vector<2x8x32xf32> to vector<2x8x8xf32>
    %30 = vector.extract_strided_slice %27 {offsets = [0, 0, 16], sizes = [2, 8, 8], strides = [1, 1, 1]} : vector<2x8x32xf32> to vector<2x8x8xf32>
    %31 = vector.extract_strided_slice %27 {offsets = [0, 0, 24], sizes = [2, 8, 8], strides = [1, 1, 1]} : vector<2x8x32xf32> to vector<2x8x8xf32>
    %32 = tpu.concatenate %28, %29, %30, %31 in 0 : vector<2x8x8xf32>, vector<2x8x8xf32>, vector<2x8x8xf32>, vector<2x8x8xf32> -> vector<8x8x8xf32>
    %33 = arith.truncf %32 : vector<8x8x8xf32> to vector<8x8x8xbf16>
    %34 = vector.shape_cast %17 : vector<16x32xf32> to vector<2x8x32xf32>
    %35 = vector.extract_strided_slice %34 {offsets = [0, 0, 0], sizes = [2, 8, 8], strides = [1, 1, 1]} : vector<2x8x32xf32> to vector<2x8x8xf32>
    %36 = vector.extract_strided_slice %34 {offsets = [0, 0, 8], sizes = [2, 8, 8], strides = [1, 1, 1]} : vector<2x8x32xf32> to vector<2x8x8xf32>
    %37 = vector.extract_strided_slice %34 {offsets = [0, 0, 16], sizes = [2, 8, 8], strides = [1, 1, 1]} : vector<2x8x32xf32> to vector<2x8x8xf32>
    %38 = vector.extract_strided_slice %34 {offsets = [0, 0, 24], sizes = [2, 8, 8], strides = [1, 1, 1]} : vector<2x8x32xf32> to vector<2x8x8xf32>
    %39 = tpu.concatenate %35, %36, %37, %38 in 0 : vector<2x8x8xf32>, vector<2x8x8xf32>, vector<2x8x8xf32>, vector<2x8x8xf32> -> vector<8x8x8xf32>
    %40 = arith.truncf %39 : vector<8x8x8xf32> to vector<8x8x8xbf16>
    %41 = vector.shape_cast %26 : vector<16x32xf32> to vector<2x8x32xf32>
    %42 = vector.extract_strided_slice %41 {offsets = [0, 0, 0], sizes = [2, 8, 8], strides = [1, 1, 1]} : vector<2x8x32xf32> to vector<2x8x8xf32>
    %43 = vector.extract_strided_slice %41 {offsets = [0, 0, 8], sizes = [2, 8, 8], strides = [1, 1, 1]} : vector<2x8x32xf32> to vector<2x8x8xf32>
    %44 = vector.extract_strided_slice %41 {offsets = [0, 0, 16], sizes = [2, 8, 8], strides = [1, 1, 1]} : vector<2x8x32xf32> to vector<2x8x8xf32>
    %45 = vector.extract_strided_slice %41 {offsets = [0, 0, 24], sizes = [2, 8, 8], strides = [1, 1, 1]} : vector<2x8x32xf32> to vector<2x8x8xf32>
    %46 = tpu.concatenate %42, %43, %44, %45 in 0 : vector<2x8x8xf32>, vector<2x8x8xf32>, vector<2x8x8xf32>, vector<2x8x8xf32> -> vector<8x8x8xf32>
    %47 = arith.truncf %46 : vector<8x8x8xf32> to vector<8x8x8xbf16>
    "tpu.trace_start"() <{level = 10 : i32, message = "bqd,bkd->bqk"}> : () -> ()
    %cst_22 = arith.constant dense<0.000000e+00> : vector<8x8x8xf32>
    %48 = tpu.matmul %33, %40, %cst_22 {dimension_numbers = #tpu.dot_dimension_numbers<[2], [2], [1], [1], [0, 0, 0, 1, 1, 1], [0], [0]>} : vector<8x8x8xbf16>, vector<8x8x8xbf16>, vector<8x8x8xf32> -> vector<8x8x8xf32>
    "tpu.trace_stop"() : () -> ()
    %cst_23 = arith.constant dense<0xFF800000> : vector<8x8xf32>
    %49 = vector.multi_reduction <maximumf>, %48, %cst_23 [2] : vector<8x8x8xf32> to vector<8x8xf32>
    %50 = vector.shape_cast %49 : vector<8x8xf32> to vector<8x8x1xf32>
    %51 = vector.broadcast %50 : vector<8x8x1xf32> to vector<8x8x8xf32>
    %52 = arith.subf %48, %51 : vector<8x8x8xf32>
    %53 = math.exp %52 : vector<8x8x8xf32>
    %cst_24 = arith.constant dense<0.000000e+00> : vector<8x8xf32>
    %54 = vector.multi_reduction <add>, %53, %cst_24 [2] : vector<8x8x8xf32> to vector<8x8xf32>
    %55 = vector.shape_cast %54 : vector<8x8xf32> to vector<8x8x1xf32>
    %56 = tpu.reciprocal %55 {approx = true} : vector<8x8x1xf32> -> vector<8x8x1xf32>
    %57 = vector.broadcast %56 : vector<8x8x1xf32> to vector<8x8x8xf32>
    %58 = arith.mulf %53, %57 : vector<8x8x8xf32>
    %59 = arith.truncf %58 : vector<8x8x8xf32> to vector<8x8x8xbf16>
    "tpu.trace_start"() <{level = 10 : i32, message = "bqk,bkd->bqd"}> : () -> ()
    %cst_25 = arith.constant dense<0.000000e+00> : vector<8x8x8xf32>
    %60 = tpu.matmul %59, %47, %cst_25 {dimension_numbers = #tpu.dot_dimension_numbers<[2], [1], [1], [2], [0, 0, 0, 1, 1, 2], [0], [0]>} : vector<8x8x8xbf16>, vector<8x8x8xbf16>, vector<8x8x8xf32> -> vector<8x8x8xf32>
    "tpu.trace_stop"() : () -> ()
    %61 = vector.shape_cast %60 : vector<8x8x8xf32> to vector<4x2x8x8xf32>
    %62 = vector.extract_strided_slice %61 {offsets = [0, 0, 0, 0], sizes = [1, 2, 8, 8], strides = [1, 1, 1, 1]} : vector<4x2x8x8xf32> to vector<1x2x8x8xf32>
    %63 = vector.shape_cast %62 : vector<1x2x8x8xf32> to vector<2x8x8xf32>
    %64 = vector.extract_strided_slice %61 {offsets = [1, 0, 0, 0], sizes = [1, 2, 8, 8], strides = [1, 1, 1, 1]} : vector<4x2x8x8xf32> to vector<1x2x8x8xf32>
    %65 = vector.shape_cast %64 : vector<1x2x8x8xf32> to vector<2x8x8xf32>
    %66 = vector.extract_strided_slice %61 {offsets = [2, 0, 0, 0], sizes = [1, 2, 8, 8], strides = [1, 1, 1, 1]} : vector<4x2x8x8xf32> to vector<1x2x8x8xf32>
    %67 = vector.shape_cast %66 : vector<1x2x8x8xf32> to vector<2x8x8xf32>
    %68 = vector.extract_strided_slice %61 {offsets = [3, 0, 0, 0], sizes = [1, 2, 8, 8], strides = [1, 1, 1, 1]} : vector<4x2x8x8xf32> to vector<1x2x8x8xf32>
    %69 = vector.shape_cast %68 : vector<1x2x8x8xf32> to vector<2x8x8xf32>
    %70 = tpu.concatenate %63, %65, %67, %69 in 2 : vector<2x8x8xf32>, vector<2x8x8xf32>, vector<2x8x8xf32>, vector<2x8x8xf32> -> vector<2x8x32xf32>
    %71 = vector.shape_cast %70 : vector<2x8x32xf32> to vector<16x32xf32>
    %72 = arith.truncf %71 : vector<16x32xf32> to vector<16x32xbf16>
    %c0_26 = arith.constant 0 : index
    %c0_27 = arith.constant 0 : index
    %73 = vector.load %arg7[%c0_26, %c0_27] : memref<32x32xbf16, #tpu.memory_space<vmem>>, vector<32x32xbf16>
    %cst_28 = arith.constant dense<0.000000e+00> : vector<16x32xf32>
    %74 = tpu.matmul %72, %73, %cst_28 {dimension_numbers = #tpu.dot_dimension_numbers<[1], [0], [0], [1], [0, 0, 1, 1], [], []>} : vector<16x32xbf16>, vector<32x32xbf16>, vector<16x32xf32> -> vector<16x32xf32>
    %c0_29 = arith.constant 0 : index
    %c0_30 = arith.constant 0 : index
    %75 = vector.load %arg11[%c0_29, %c0_30] : memref<1x32xf32, #tpu.memory_space<vmem>>, vector<1x32xf32>
    %76 = vector.broadcast %75 : vector<1x32xf32> to vector<16x32xf32>
    %77 = arith.addf %74, %76 : vector<16x32xf32>
    %cst_31 = arith.constant 0.000000e+00 : f32
    %78 = vector.broadcast %cst_31 : f32 to vector<16x32xf32>
    %79 = arith.maximumf %77, %78 : vector<16x32xf32>
    %c0_32 = arith.constant 0 : index
    %c0_33 = arith.constant 0 : index
    %80 = vector.load %arg12[%c0_32, %c0_33] : memref<16x32xf32, #tpu.memory_space<vmem>>, vector<16x32xf32>
    tpu.vector_store %arg12[%c0_32, %c0_33], %79 {strides = array<i32>} : memref<16x32xf32, #tpu.memory_space<vmem>>, vector<16x32xf32>,
    return
  }
  func.func @transform_0(%arg0: i32) -> (i32, i32) {
    %c0_i32 = arith.constant 0 : i32
    %c0_i32_0 = arith.constant 0 : i32
    return %arg0, %c0_i32 : i32, i32
  }
  func.func @transform_1(%arg0: i32) -> (i32, i32) {
    %c0_i32 = arith.constant 0 : i32
    %c0_i32_0 = arith.constant 0 : i32
    return %arg0, %c0_i32 : i32, i32
  }
  func.func @transform_2(%arg0: i32) -> (i32, i32) {
    %c0_i32 = arith.constant 0 : i32
    %c0_i32_0 = arith.constant 0 : i32
    return %arg0, %c0_i32 : i32, i32
  }
  func.func @transform_3(%arg0: i32) -> (i32, i32) {
    %c0_i32 = arith.constant 0 : i32
    %c0_i32_0 = arith.constant 0 : i32
    %c0_i32_1 = arith.constant 0 : i32
    return %c0_i32, %c0_i32_0 : i32, i32
  }
  func.func @transform_4(%arg0: i32) -> (i32, i32) {
    %c0_i32 = arith.constant 0 : i32
    %c0_i32_0 = arith.constant 0 : i32
    %c0_i32_1 = arith.constant 0 : i32
    return %c0_i32, %c0_i32_0 : i32, i32
  }
  func.func @transform_5(%arg0: i32) -> (i32, i32) {
    %c0_i32 = arith.constant 0 : i32
    %c0_i32_0 = arith.constant 0 : i32
    %c0_i32_1 = arith.constant 0 : i32
    return %c0_i32, %c0_i32_0 : i32, i32
  }
  func.func @transform_6(%arg0: i32) -> (i32, i32) {
    %c0_i32 = arith.constant 0 : i32
    %c0_i32_0 = arith.constant 0 : i32
    %c0_i32_1 = arith.constant 0 : i32
    return %c0_i32, %c0_i32_0 : i32, i32
  }
  func.func @transform_7(%arg0: i32) -> (i32, i32) {
    %c0_i32 = arith.constant 0 : i32
    %c0_i32_0 = arith.constant 0 : i32
    %c0_i32_1 = arith.constant 0 : i32
    return %c0_i32, %c0_i32_0 : i32, i32
  }
  func.func @transform_8(%arg0: i32) -> (i32, i32) {
    %c0_i32 = arith.constant 0 : i32
    %c0_i32_0 = arith.constant 0 : i32
    %c0_i32_1 = arith.constant 0 : i32
    return %c0_i32, %c0_i32_0 : i32, i32
  }
  func.func @transform_9(%arg0: i32) -> (i32, i32) {
    %c0_i32 = arith.constant 0 : i32
    %c0_i32_0 = arith.constant 0 : i32
    %c0_i32_1 = arith.constant 0 : i32
    return %c0_i32, %c0_i32_0 : i32, i32
  }
  func.func @transform_10(%arg0: i32) -> (i32, i32) {
    %c0_i32 = arith.constant 0 : i32
    %c0_i32_0 = arith.constant 0 : i32
    %c0_i32_1 = arith.constant 0 : i32
    return %c0_i32, %c0_i32_0 : i32, i32
  }
  func.func @transform_11(%arg0: i32) -> (i32, i32) {
    %c0_i32 = arith.constant 0 : i32
    %c0_i32_0 = arith.constant 0 : i32
    return %arg0, %c0_i32 : i32, i32
  }
}

</mosaic_0001>

<llo_original>
// kernel: tpu_custom_call.1
$region0: #{tpu_custom_call.1}
  #allocation0 [shape = 'u32[]', space=smem, size = 0x4, offset = 0x4, fixed_abs, tag = 'smem constant byte address 0x4 - core index']
  #allocation1 [shape = 'u32[144,128]{1,0:T(1,128)}', space=vmem, size = 0x12000, scoped, tag = 'internal scratch']
  %s0 = inlined_call_operand.hbm [shape: f32[16,32], index: 0, kind: input, shape index: {}]
  %s1 = inlined_call_operand.hbm [shape: f32[16,32], index: 1, kind: input, shape index: {}]
  %s2 = inlined_call_operand.hbm [shape: f32[16,32], index: 2, kind: input, shape index: {}]
  %s3 = inlined_call_operand.hbm [shape: bf16[32,32], index: 3, kind: input, shape index: {}]
  %s4 = inlined_call_operand.hbm [shape: bf16[32,32], index: 4, kind: input, shape index: {}]
  %s5 = inlined_call_operand.vmem [shape: bf16[32,32], index: 5, kind: input, shape index: {}]
  %s6 = inlined_call_operand.hbm [shape: bf16[32,32], index: 6, kind: input, shape index: {}]
  %s7 = inlined_call_operand.vmem [shape: f32[1,32], index: 7, kind: input, shape index: {}]
  %s8 = inlined_call_operand.vmem [shape: f32[1,32], index: 8, kind: input, shape index: {}]
  %s9 = inlined_call_operand.vmem [shape: f32[1,32], index: 9, kind: input, shape index: {}]
  %s10 = inlined_call_operand.vmem [shape: f32[1,32], index: 10, kind: input, shape index: {}]
  %s11 = inlined_call_operand.hbm [shape: f32[16,32], index: 11, kind: output, shape index: {}]
  %s12 = sld [smem:[#allocation0]]
  $region78: #{tpu_custom_call.1} parent=0
    _
  %s14 = ssub.s32 1, %s12
  %s15 = scalar_select 0, %s14, %s12
  $region1: #{tpu_custom_call.1} parent=0
    #allocation2 [shape = 'u8[8192]{0}', space=vmem, size = 0x2000, scoped, tag = 'input window, operand 0, single buffered']
    #allocation3 [shape = 's32[1]{0}', space=sflag, size = 0x4, scoped, tag = 'scoped memory for tpu_custom_call.1']
    #allocation4 [shape = 's32[1]{0}', space=sflag, size = 0x4, scoped, tag = 'scoped memory for tpu_custom_call.1']
    #allocation5 [shape = 'u8[8192]{0}', space=vmem, size = 0x2000, scoped, tag = 'input window, operand 1, single buffered']
    #allocation6 [shape = 's32[1]{0}', space=sflag, size = 0x4, scoped, tag = 'scoped memory for tpu_custom_call.1']
    #allocation7 [shape = 'u8[8192]{0}', space=vmem, size = 0x2000, scoped, tag = 'input window, operand 2, single buffered']
    #allocation8 [shape = 'u8[8192]{0}', space=vmem, size = 0x2000, scoped, tag = 'input window, operand 3, single buffered']
    #allocation9 [shape = 's32[1]{0}', space=sflag, size = 0x4, scoped, tag = 'scoped memory for tpu_custom_call.1']
    #allocation10 [shape = 'u8[8192]{0}', space=vmem, size = 0x2000, scoped, tag = 'input window, operand 4, single buffered']
    #allocation11 [shape = 'u8[8192]{0}', space=vmem, size = 0x2000, scoped, tag = 'input window, operand 6, single buffered']
    #allocation12 [shape = 's32[1]{0}', space=sflag, size = 0x4, scoped, tag = 'scoped memory for tpu_custom_call.1']
    #allocation13 [shape = 'u8[8192]{0}', space=vmem, size = 0x2000, scoped, tag = 'output window, operand 0, single buffered']
    %16 = vsyncpa [#allocation3], 0
    %17 = vsyncpa [#allocation6], 0
    %18 = vsyncpa [#allocation9], 0
    %19 = vsyncpa [#allocation12], 0
    %20 = vsyncpa [#allocation4], 0
    // Predicated region
    $region2: #{tpu_custom_call.1} parent=1 // pred_check
      _
    $region3: #{tpu_custom_call.1} parent=1 // pred_check_branch
      %22 = sbr.rel (0) target = $region5
    $region4: #{tpu_custom_call.1} parent=1 // pred_region
      %s24 = ssub.s32 256, 256
      %25 = vsyncadd [#allocation3], %s24
      %s26 = sshll.u32 [#allocation2], 4
      %s27 = int_to_ptr.vmem [resolvable:$true] %s26
      %32 = dma.hbm_to_vmem [thread:$0]  %s0, 256, %s27, [#allocation3], 128, 128, 8
    $region5: #{tpu_custom_call.1} parent=1 // pred_fallthru
      _
    // Predicated region
    $region6: #{tpu_custom_call.1} parent=1 // pred_check
      _
    $region7: #{tpu_custom_call.1} parent=1 // pred_check_branch
      %34 = sbr.rel (0) target = $region9
    $region8: #{tpu_custom_call.1} parent=1 // pred_region
      %s36 = ssub.s32 256, 256
      %37 = vsyncadd [#allocation6], %s36
      %s38 = sshll.u32 [#allocation5], 4
      %s39 = int_to_ptr.vmem [resolvable:$true] %s38
      %44 = dma.hbm_to_vmem [thread:$0]  %s1, 256, %s39, [#allocation6], 128, 128, 8
    $region9: #{tpu_custom_call.1} parent=1 // pred_fallthru
      _
    // Predicated region
    $region10: #{tpu_custom_call.1} parent=1 // pred_check
      _
    $region11: #{tpu_custom_call.1} parent=1 // pred_check_branch
      %46 = sbr.rel (0) target = $region13
    $region12: #{tpu_custom_call.1} parent=1 // pred_region
      %s48 = ssub.s32 256, 256
      %49 = vsyncadd [#allocation6], %s48
      %s50 = sshll.u32 [#allocation7], 4
      %s51 = int_to_ptr.vmem [resolvable:$true] %s50
      %56 = dma.hbm_to_vmem [thread:$0]  %s2, 256, %s51, [#allocation6], 128, 128, 8
    $region13: #{tpu_custom_call.1} parent=1 // pred_fallthru
      _
    // Predicated region
    $region14: #{tpu_custom_call.1} parent=1 // pred_check
      _
    $region15: #{tpu_custom_call.1} parent=1 // pred_check_branch
      %58 = sbr.rel (0) target = $region17
    $region16: #{tpu_custom_call.1} parent=1 // pred_region
      %s60 = ssub.s32 256, 256
      %61 = vsyncadd [#allocation9], %s60
      %s62 = sshll.u32 [#allocation8], 4
      %s63 = int_to_ptr.vmem [resolvable:$true] %s62
      %68 = dma.hbm_to_vmem [thread:$0]  %s3, 256, %s63, [#allocation9], 64, 64, 4
    $region17: #{tpu_custom_call.1} parent=1 // pred_fallthru
      _
    // Predicated region
    $region18: #{tpu_custom_call.1} parent=1 // pred_check
      _
    $region19: #{tpu_custom_call.1} parent=1 // pred_check_branch
      %70 = sbr.rel (0) target = $region21
    $region20: #{tpu_custom_call.1} parent=1 // pred_region
      %s72 = ssub.s32 256, 256
      %73 = vsyncadd [#allocation9], %s72
      %s74 = sshll.u32 [#allocation10], 4
      %s75 = int_to_ptr.vmem [resolvable:$true] %s74
      %80 = dma.hbm_to_vmem [thread:$0]  %s4, 256, %s75, [#allocation9], 64, 64, 4
    $region21: #{tpu_custom_call.1} parent=1 // pred_fallthru
      _
    // Predicated region
    $region22: #{tpu_custom_call.1} parent=1 // pred_check
      _
    $region23: #{tpu_custom_call.1} parent=1 // pred_check_branch
      %82 = sbr.rel (0) target = $region25
    $region24: #{tpu_custom_call.1} parent=1 // pred_region
      _
    $region25: #{tpu_custom_call.1} parent=1 // pred_fallthru
      _
    // Predicated region
    $region26: #{tpu_custom_call.1} parent=1 // pred_check
      _
    $region27: #{tpu_custom_call.1} parent=1 // pred_check_branch
      %84 = sbr.rel (0) target = $region29
    $region28: #{tpu_custom_call.1} parent=1 // pred_region
      %s86 = ssub.s32 256, 256
      %87 = vsyncadd [#allocation12], %s86
      %s88 = sshll.u32 [#allocation11], 4
      %s89 = int_to_ptr.vmem [resolvable:$true] %s88
      %94 = dma.hbm_to_vmem [thread:$0]  %s6, 256, %s89, [#allocation12], 64, 64, 4
    $region29: #{tpu_custom_call.1} parent=1 // pred_fallthru
      _
    // Predicated region
    $region30: #{tpu_custom_call.1} parent=1 // pred_check
      _
    $region31: #{tpu_custom_call.1} parent=1 // pred_check_branch
      %96 = sbr.rel (0) target = $region33
    $region32: #{tpu_custom_call.1} parent=1 // pred_region
      _
    $region33: #{tpu_custom_call.1} parent=1 // pred_fallthru
      _
    // Predicated region
    $region34: #{tpu_custom_call.1} parent=1 // pred_check
      _
    $region35: #{tpu_custom_call.1} parent=1 // pred_check_branch
      %98 = sbr.rel (0) target = $region37
    $region36: #{tpu_custom_call.1} parent=1 // pred_region
      _
    $region37: #{tpu_custom_call.1} parent=1 // pred_fallthru
      _
    // Predicated region
    $region38: #{tpu_custom_call.1} parent=1 // pred_check
      _
    $region39: #{tpu_custom_call.1} parent=1 // pred_check_branch
      %100 = sbr.rel (0) target = $region41
    $region40: #{tpu_custom_call.1} parent=1 // pred_region
      _
    $region41: #{tpu_custom_call.1} parent=1 // pred_fallthru
      _
    // Predicated region
    $region42: #{tpu_custom_call.1} parent=1 // pred_check
      _
    $region43: #{tpu_custom_call.1} parent=1 // pred_check_branch
      %102 = sbr.rel (0) target = $region45
    $region44: #{tpu_custom_call.1} parent=1 // pred_region
      _
    $region45: #{tpu_custom_call.1} parent=1 // pred_fallthru
      _
    // Predicated region
    $region46: #{tpu_custom_call.1} parent=1 // pred_check
      _
    $region47: #{tpu_custom_call.1} parent=1 // pred_check_branch
      %104 = sbr.rel (0) target = $region49
    $region48: #{tpu_custom_call.1} parent=1 // pred_region
      %105 = dma.done [#allocation3], 256
    $region49: #{tpu_custom_call.1} parent=1 // pred_fallthru
      _
    // Predicated region
    $region50: #{tpu_custom_call.1} parent=1 // pred_check
      _
    $region51: #{tpu_custom_call.1} parent=1 // pred_check_branch
      %107 = sbr.rel (0) target = $region53
    $region52: #{tpu_custom_call.1} parent=1 // pred_region
      %108 = dma.done [#allocation6], 256
    $region53: #{tpu_custom_call.1} parent=1 // pred_fallthru
      _
    // Predicated region
    $region54: #{tpu_custom_call.1} parent=1 // pred_check
      _
    $region55: #{tpu_custom_call.1} parent=1 // pred_check_branch
      %110 = sbr.rel (0) target = $region57
    $region56: #{tpu_custom_call.1} parent=1 // pred_region
      %111 = dma.done [#allocation6], 256
    $region57: #{tpu_custom_call.1} parent=1 // pred_fallthru
      _
    // Predicated region
    $region58: #{tpu_custom_call.1} parent=1 // pred_check
      _
    $region59: #{tpu_custom_call.1} parent=1 // pred_check_branch
      %113 = sbr.rel (0) target = $region61
    $region60: #{tpu_custom_call.1} parent=1 // pred_region
      %114 = dma.done [#allocation9], 256
    $region61: #{tpu_custom_call.1} parent=1 // pred_fallthru
      _
    // Predicated region
    $region62: #{tpu_custom_call.1} parent=1 // pred_check
      _
    $region63: #{tpu_custom_call.1} parent=1 // pred_check_branch
      %116 = sbr.rel (0) target = $region65
    $region64: #{tpu_custom_call.1} parent=1 // pred_region
      %117 = dma.done [#allocation9], 256
    $region65: #{tpu_custom_call.1} parent=1 // pred_fallthru
      _
    // Predicated region
    $region66: #{tpu_custom_call.1} parent=1 // pred_check
      _
    $region67: #{tpu_custom_call.1} parent=1 // pred_check_branch
      %119 = sbr.rel (0) target = $region69
    $region68: #{tpu_custom_call.1} parent=1 // pred_region
      %120 = dma.done [#allocation12], 256
    $region69: #{tpu_custom_call.1} parent=1 // pred_fallthru
      _
    %v122 = vld [vmem:[#allocation2] sm:$0xff]
    %v123 = vld [vmem:[#allocation2 + $0x8] sm:$0xff]
    %v124 = vpack.c.bf16 %v123, %v122
    %v125 = vld [vmem:[#allocation8] sm:$0xf]
    %v126 = vld [vmem:[#allocation8 + $0x4] sm:$0xf]
    %v127 = vld [vmem:[#allocation8 + $0x8] sm:$0xf]
    %v128 = vld [vmem:[#allocation8 + $0xc] sm:$0xf]
    %v129 = vld [vmem:[%s7] sm:$0x1]
    %v131 = vlaneseq
    %v132 = vshrl.u32 %v131, 7
    %v133 = vsub.s32 0, %v132
    %v134 = vrot.slane %v129, %v133
    %v140 = vunpack.c.l.b16 %v125
    %v141 = vunpack.c.l.b16 %v126
    %v142 = vunpack.c.l.b16 %v127
    %v143 = vunpack.c.l.b16 %v128
    %v144 = vpack.c.b16 %v141, %v140
    %v145 = vpack.c.b16 %v143, %v142
    %vm148 = vcmask 261120
    %v150 = vsel %vm148, %v124, 0
    %152 = vmatprep.subr.bf16.mxu0 0
    %153 = vmatpush1.bf16.msra.mxu0 %v144
    %154 = vmatprep.subr.bf16.mxu0 0
    %155 = vmatpush1.bf16.msra.mxu0 %v145
    %156 = vmatprep.subr.bf16.mxu0 0
    %157 = vmatpush1.bf16.msra.mxu0 0
    %158 = vmatprep.subr.bf16.mxu0 0
    %159 = vmatpush1.bf16.msra.mxu0 0
    %160 = vmatprep.subr.bf16.mxu0 0
    %161 = vmatpush1.bf16.msra.mxu0 0
    %162 = vmatprep.subr.bf16.mxu0 0
    %163 = vmatpush1.bf16.msra.mxu0 0
    %164 = vmatprep.subr.bf16.mxu0 0
    %165 = vmatpush1.bf16.msra.mxu0 0
    %166 = vmatprep.subr.bf16.mxu0 0
    %167 = vmatpush1.bf16.msra.mxu0 0
    %168 = vmatprep.subr.bf16.mxu0 0
    %169 = vmatpush1.bf16.msra.mxu0 0
    %170 = vmatprep.subr.bf16.mxu0 0
    %171 = vmatpush1.bf16.msra.mxu0 0
    %172 = vmatprep.subr.bf16.mxu0 0
    %173 = vmatpush1.bf16.msra.mxu0 0
    %174 = vmatprep.subr.bf16.mxu0 0
    %175 = vmatpush1.bf16.msra.mxu0 0
    %176 = vmatprep.subr.bf16.mxu0 0
    %177 = vmatpush1.bf16.msra.mxu0 0
    %178 = vmatprep.subr.bf16.mxu0 0
    %179 = vmatpush1.bf16.msra.mxu0 0
    %180 = vmatprep.subr.bf16.mxu0 0
    %181 = vmatpush1.bf16.msra.mxu0 0
    %182 = vmatprep.subr.bf16.mxu0 0
    %183 = vmatpush1.bf16.msra.mxu0 0
    %184 = vmatprep.mubr.bf16.mxu0 0
    %185 = vmatmul.mubr.bf16.gmra.mrb[0].mxu0 %v150
    %v186 = vpop.f32.mrb[0].mxu0
    %v187 = vadd.f32 %v134, %v186
    %v188 = vpop.f32.mrb[0].mxu0
    %v189 = vpop.f32.mrb[0].mxu0
    %v190 = vadd.f32 %v134, %v189
    %v191 = vpop.f32.mrb[0].mxu0
    %192 = vdwg.mxu0
    %v193 = vmax.f32 %v187, 0.0
    %v194 = vmax.f32 %v190, 0.0
    %v195 = vld [vmem:[#allocation5] sm:$0xff]
    %v196 = vld [vmem:[#allocation5 + $0x8] sm:$0xff]
    %v197 = vpack.c.bf16 %v196, %v195
    %v198 = vld [vmem:[#allocation10] sm:$0xf]
    %v199 = vld [vmem:[#allocation10 + $0x4] sm:$0xf]
    %v200 = vld [vmem:[#allocation10 + $0x8] sm:$0xf]
    %v201 = vld [vmem:[#allocation10 + $0xc] sm:$0xf]
    %v202 = vld [vmem:[%s8] sm:$0x1]
    %v204 = vlaneseq
    %v205 = vshrl.u32 %v204, 7
    %v206 = vsub.s32 0, %v205
    %v207 = vrot.slane %v202, %v206
    %v213 = vunpack.c.l.b16 %v198
    %v214 = vunpack.c.l.b16 %v199
    %v215 = vunpack.c.l.b16 %v200
    %v216 = vunpack.c.l.b16 %v201
    %v217 = vpack.c.b16 %v214, %v213
    %v218 = vpack.c.b16 %v216, %v215
    %v222 = vsel %vm148, %v197, 0
    %224 = vmatprep.subr.bf16.mxu0 0
    %225 = vmatpush1.bf16.msra.mxu0 %v217
    %226 = vmatprep.subr.bf16.mxu0 0
    %227 = vmatpush1.bf16.msra.mxu0 %v218
    %228 = vmatprep.subr.bf16.mxu0 0
    %229 = vmatpush1.bf16.msra.mxu0 0
    %230 = vmatprep.subr.bf16.mxu0 0
    %231 = vmatpush1.bf16.msra.mxu0 0
    %232 = vmatprep.subr.bf16.mxu0 0
    %233 = vmatpush1.bf16.msra.mxu0 0
    %234 = vmatprep.subr.bf16.mxu0 0
    %235 = vmatpush1.bf16.msra.mxu0 0
    %236 = vmatprep.subr.bf16.mxu0 0
    %237 = vmatpush1.bf16.msra.mxu0 0
    %238 = vmatprep.subr.bf16.mxu0 0
    %239 = vmatpush1.bf16.msra.mxu0 0
    %240 = vmatprep.subr.bf16.mxu0 0
    %241 = vmatpush1.bf16.msra.mxu0 0
    %242 = vmatprep.subr.bf16.mxu0 0
    %243 = vmatpush1.bf16.msra.mxu0 0
    %244 = vmatprep.subr.bf16.mxu0 0
    %245 = vmatpush1.bf16.msra.mxu0 0
    %246 = vmatprep.subr.bf16.mxu0 0
    %247 = vmatpush1.bf16.msra.mxu0 0
    %248 = vmatprep.subr.bf16.mxu0 0
    %249 = vmatpush1.bf16.msra.mxu0 0
    %250 = vmatprep.subr.bf16.mxu0 0
    %251 = vmatpush1.bf16.msra.mxu0 0
    %252 = vmatprep.subr.bf16.mxu0 0
    %253 = vmatpush1.bf16.msra.mxu0 0
    %254 = vmatprep.subr.bf16.mxu0 0
    %255 = vmatpush1.bf16.msra.mxu0 0
    %256 = vmatprep.mubr.bf16.mxu0 0
    %257 = vmatmul.mubr.bf16.gmra.mrb[0].mxu0 %v222
    %v258 = vpop.f32.mrb[0].mxu0
    %v259 = vadd.f32 %v207, %v258
    %v260 = vpop.f32.mrb[0].mxu0
    %v261 = vpop.f32.mrb[0].mxu0
    %v262 = vadd.f32 %v207, %v261
    %v263 = vpop.f32.mrb[0].mxu0
    %264 = vdwg.mxu0
    %v265 = vmax.f32 %v259, 0.0
    %v266 = vmax.f32 %v262, 0.0
    %v267 = vld [vmem:[#allocation7] sm:$0xff]
    %v268 = vld [vmem:[#allocation7 + $0x8] sm:$0xff]
    %v269 = vpack.c.bf16 %v268, %v267
    %v270 = vld [vmem:[%s5] sm:$0xf]
    %v271 = vld [vmem:[%s5 + $0x4] sm:$0xf]
    %v272 = vld [vmem:[%s5 + $0x8] sm:$0xf]
    %v273 = vld [vmem:[%s5 + $0xc] sm:$0xf]
    %v274 = vld [vmem:[%s9] sm:$0x1]
    %v276 = vlaneseq
    %v277 = vshrl.u32 %v276, 7
    %v278 = vsub.s32 0, %v277
    %v279 = vrot.slane %v274, %v278
    %v285 = vunpack.c.l.b16 %v270
    %v286 = vunpack.c.l.b16 %v271
    %v287 = vunpack.c.l.b16 %v272
    %v288 = vunpack.c.l.b16 %v273
    %v289 = vpack.c.b16 %v286, %v285
    %v290 = vpack.c.b16 %v288, %v287
    %v294 = vsel %vm148, %v269, 0
    %296 = vmatprep.subr.bf16.mxu0 0
    %297 = vmatpush1.bf16.msra.mxu0 %v289
    %298 = vmatprep.subr.bf16.mxu0 0
    %299 = vmatpush1.bf16.msra.mxu0 %v290
    %300 = vmatprep.subr.bf16.mxu0 0
    %301 = vmatpush1.bf16.msra.mxu0 0
    %302 = vmatprep.subr.bf16.mxu0 0
    %303 = vmatpush1.bf16.msra.mxu0 0
    %304 = vmatprep.subr.bf16.mxu0 0
    %305 = vmatpush1.bf16.msra.mxu0 0
    %306 = vmatprep.subr.bf16.mxu0 0
    %307 = vmatpush1.bf16.msra.mxu0 0
    %308 = vmatprep.subr.bf16.mxu0 0
    %309 = vmatpush1.bf16.msra.mxu0 0
    %310 = vmatprep.subr.bf16.mxu0 0
    %311 = vmatpush1.bf16.msra.mxu0 0
    %312 = vmatprep.subr.bf16.mxu0 0
    %313 = vmatpush1.bf16.msra.mxu0 0
    %314 = vmatprep.subr.bf16.mxu0 0
    %315 = vmatpush1.bf16.msra.mxu0 0
    %316 = vmatprep.subr.bf16.mxu0 0
    %317 = vmatpush1.bf16.msra.mxu0 0
    %318 = vmatprep.subr.bf16.mxu0 0
    %319 = vmatpush1.bf16.msra.mxu0 0
    %320 = vmatprep.subr.bf16.mxu0 0
    %321 = vmatpush1.bf16.msra.mxu0 0
    %322 = vmatprep.subr.bf16.mxu0 0
    %323 = vmatpush1.bf16.msra.mxu0 0
    %324 = vmatprep.subr.bf16.mxu0 0
    %325 = vmatpush1.bf16.msra.mxu0 0
    %326 = vmatprep.subr.bf16.mxu0 0
    %327 = vmatpush1.bf16.msra.mxu0 0
    %328 = vmatprep.mubr.bf16.mxu0 0
    %329 = vmatmul.mubr.bf16.gmra.mrb[0].mxu0 %v294
    %v330 = vpop.f32.mrb[0].mxu0
    %v331 = vadd.f32 %v279, %v330
    %v332 = vpop.f32.mrb[0].mxu0
    %v333 = vpop.f32.mrb[0].mxu0
    %v334 = vadd.f32 %v279, %v333
    %v335 = vpop.f32.mrb[0].mxu0
    %336 = vdwg.mxu0
    %v337 = vmax.f32 %v331, 0.0
    %v338 = vmax.f32 %v334, 0.0
    %341 = vrot.lane.b32.xlu0 %v193, 120
    %v342 = vpop.permute.xlu0 %341
    %343 = vrot.lane.b32.xlu0 %v194, 120
    %v344 = vpop.permute.xlu0 %343
    %347 = vrot.lane.b32.xlu0 %v193, 112
    %v348 = vpop.permute.xlu0 %347
    %349 = vrot.lane.b32.xlu0 %v194, 112
    %v350 = vpop.permute.xlu0 %349
    %353 = vrot.lane.b32.xlu0 %v193, 104
    %v354 = vpop.permute.xlu0 %353
    %355 = vrot.lane.b32.xlu0 %v194, 104
    %v356 = vpop.permute.xlu0 %355
    %v359 = vpack.c.bf16 %v193, %v193
    %v360 = vpack.c.bf16 %v194, %v194
    %v361 = vpack.c.bf16 %v342, %v342
    %v362 = vpack.c.bf16 %v344, %v344
    %v363 = vpack.c.bf16 %v348, %v348
    %v364 = vpack.c.bf16 %v350, %v350
    %v365 = vpack.c.bf16 %v354, %v354
    %v366 = vpack.c.bf16 %v356, %v356
    %369 = vrot.lane.b32.xlu0 %v265, 120
    %v370 = vpop.permute.xlu0 %369
    %371 = vrot.lane.b32.xlu0 %v266, 120
    %v372 = vpop.permute.xlu0 %371
    %375 = vrot.lane.b32.xlu0 %v265, 112
    %v376 = vpop.permute.xlu0 %375
    %377 = vrot.lane.b32.xlu0 %v266, 112
    %v378 = vpop.permute.xlu0 %377
    %381 = vrot.lane.b32.xlu0 %v265, 104
    %v382 = vpop.permute.xlu0 %381
    %383 = vrot.lane.b32.xlu0 %v266, 104
    %v384 = vpop.permute.xlu0 %383
    %v387 = vpack.c.bf16 %v265, %v265
    %v388 = vpack.c.bf16 %v266, %v266
    %v389 = vpack.c.bf16 %v370, %v370
    %v390 = vpack.c.bf16 %v372, %v372
    %v391 = vpack.c.bf16 %v376, %v376
    %v392 = vpack.c.bf16 %v378, %v378
    %v393 = vpack.c.bf16 %v382, %v382
    %v394 = vpack.c.bf16 %v384, %v384
    %397 = vrot.lane.b32.xlu0 %v337, 120
    %v398 = vpop.permute.xlu0 %397
    %399 = vrot.lane.b32.xlu0 %v338, 120
    %v400 = vpop.permute.xlu0 %399
    %403 = vrot.lane.b32.xlu0 %v337, 112
    %v404 = vpop.permute.xlu0 %403
    %405 = vrot.lane.b32.xlu0 %v338, 112
    %v406 = vpop.permute.xlu0 %405
    %409 = vrot.lane.b32.xlu0 %v337, 104
    %v410 = vpop.permute.xlu0 %409
    %411 = vrot.lane.b32.xlu0 %v338, 104
    %v412 = vpop.permute.xlu0 %411
    %v415 = vpack.c.bf16 %v337, %v337
    %v416 = vpack.c.bf16 %v338, %v338
    %v417 = vpack.c.bf16 %v398, %v398
    %v418 = vpack.c.bf16 %v400, %v400
    %v419 = vpack.c.bf16 %v404, %v404
    %v420 = vpack.c.bf16 %v406, %v406
    %v421 = vpack.c.bf16 %v410, %v410
    %v422 = vpack.c.bf16 %v412, %v412
    %vm423 = vcmask 64512
    %v425 = vsel %vm423, %v359, 0
    %v428 = vsel %vm423, %v387, 0
    %430 = vmatprep.subr.bf16.mxu0 0
    %431 = vmatpush1.bf16.xpose.msra.mxu0 %v428
    %432 = vmatprep.subr.bf16.mxu0 0
    %433 = vmatpush1.bf16.xpose.msra.mxu0 0
    %434 = vmatprep.subr.bf16.mxu0 0
    %435 = vmatpush1.bf16.xpose.msra.mxu0 0
    %436 = vmatprep.subr.bf16.mxu0 0
    %437 = vmatpush1.bf16.xpose.msra.mxu0 0
    %438 = vmatprep.subr.bf16.mxu0 0
    %439 = vmatpush1.bf16.xpose.msra.mxu0 0
    %440 = vmatprep.subr.bf16.mxu0 0
    %441 = vmatpush1.bf16.xpose.msra.mxu0 0
    %442 = vmatprep.subr.bf16.mxu0 0
    %443 = vmatpush1.bf16.xpose.msra.mxu0 0
    %444 = vmatprep.subr.bf16.mxu0 0
    %445 = vmatpush1.bf16.xpose.msra.mxu0 0
    %446 = vmatprep.subr.bf16.mxu0 0
    %447 = vmatpush1.bf16.xpose.msra.mxu0 0
    %448 = vmatprep.subr.bf16.mxu0 0
    %449 = vmatpush1.bf16.xpose.msra.mxu0 0
    %450 = vmatprep.subr.bf16.mxu0 0
    %451 = vmatpush1.bf16.xpose.msra.mxu0 0
    %452 = vmatprep.subr.bf16.mxu0 0
    %453 = vmatpush1.bf16.xpose.msra.mxu0 0
    %454 = vmatprep.subr.bf16.mxu0 0
    %455 = vmatpush1.bf16.xpose.msra.mxu0 0
    %456 = vmatprep.subr.bf16.mxu0 0
    %457 = vmatpush1.bf16.xpose.msra.mxu0 0
    %458 = vmatprep.subr.bf16.mxu0 0
    %459 = vmatpush1.bf16.xpose.msra.mxu0 0
    %460 = vmatprep.subr.bf16.mxu0 0
    %461 = vmatpush1.bf16.xpose.msra.mxu0 0
    %462 = vmatprep.mubr.bf16.mxu0 0
    %463 = vmatmul.mubr.bf16.gmra.mrb[0].mxu0 %v425
    %v464 = vpop.f32.mrb[0].mxu0
    %v465 = vadd.f32 0.0, %v464
    %v466 = vpop.f32.mrb[0].mxu0
    %v467 = vpop.f32.mrb[0].mxu0
    %v468 = vpop.f32.mrb[0].mxu0
    %469 = vdwg.mxu0
    %v471 = vsel %vm423, %v360, 0
    %v474 = vsel %vm423, %v388, 0
    %476 = vmatprep.subr.bf16.mxu0 0
    %477 = vmatpush1.bf16.xpose.msra.mxu0 %v474
    %478 = vmatprep.subr.bf16.mxu0 0
    %479 = vmatpush1.bf16.xpose.msra.mxu0 0
    %480 = vmatprep.subr.bf16.mxu0 0
    %481 = vmatpush1.bf16.xpose.msra.mxu0 0
    %482 = vmatprep.subr.bf16.mxu0 0
    %483 = vmatpush1.bf16.xpose.msra.mxu0 0
    %484 = vmatprep.subr.bf16.mxu0 0
    %485 = vmatpush1.bf16.xpose.msra.mxu0 0
    %486 = vmatprep.subr.bf16.mxu0 0
    %487 = vmatpush1.bf16.xpose.msra.mxu0 0
    %488 = vmatprep.subr.bf16.mxu0 0
    %489 = vmatpush1.bf16.xpose.msra.mxu0 0
    %490 = vmatprep.subr.bf16.mxu0 0
    %491 = vmatpush1.bf16.xpose.msra.mxu0 0
    %492 = vmatprep.subr.bf16.mxu0 0
    %493 = vmatpush1.bf16.xpose.msra.mxu0 0
    %494 = vmatprep.subr.bf16.mxu0 0
    %495 = vmatpush1.bf16.xpose.msra.mxu0 0
    %496 = vmatprep.subr.bf16.mxu0 0
    %497 = vmatpush1.bf16.xpose.msra.mxu0 0
    %498 = vmatprep.subr.bf16.mxu0 0
    %499 = vmatpush1.bf16.xpose.msra.mxu0 0
    %500 = vmatprep.subr.bf16.mxu0 0
    %501 = vmatpush1.bf16.xpose.msra.mxu0 0
    %502 = vmatprep.subr.bf16.mxu0 0
    %503 = vmatpush1.bf16.xpose.msra.mxu0 0
    %504 = vmatprep.subr.bf16.mxu0 0
    %505 = vmatpush1.bf16.xpose.msra.mxu0 0
    %506 = vmatprep.subr.bf16.mxu0 0
    %507 = vmatpush1.bf16.xpose.msra.mxu0 0
    %508 = vmatprep.mubr.bf16.mxu0 0
    %509 = vmatmul.mubr.bf16.gmra.mrb[0].mxu0 %v471
    %v510 = vpop.f32.mrb[0].mxu0
    %v511 = vadd.f32 0.0, %v510
    %v512 = vpop.f32.mrb[0].mxu0
    %v513 = vpop.f32.mrb[0].mxu0
    %v514 = vpop.f32.mrb[0].mxu0
    %515 = vdwg.mxu0
    %v517 = vsel %vm423, %v361, 0
    %v520 = vsel %vm423, %v389, 0
    %522 = vmatprep.subr.bf16.mxu0 0
    %523 = vmatpush1.bf16.xpose.msra.mxu0 %v520
    %524 = vmatprep.subr.bf16.mxu0 0
    %525 = vmatpush1.bf16.xpose.msra.mxu0 0
    %526 = vmatprep.subr.bf16.mxu0 0
    %527 = vmatpush1.bf16.xpose.msra.mxu0 0
    %528 = vmatprep.subr.bf16.mxu0 0
    %529 = vmatpush1.bf16.xpose.msra.mxu0 0
    %530 = vmatprep.subr.bf16.mxu0 0
    %531 = vmatpush1.bf16.xpose.msra.mxu0 0
    %532 = vmatprep.subr.bf16.mxu0 0
    %533 = vmatpush1.bf16.xpose.msra.mxu0 0
    %534 = vmatprep.subr.bf16.mxu0 0
    %535 = vmatpush1.bf16.xpose.msra.mxu0 0
    %536 = vmatprep.subr.bf16.mxu0 0
    %537 = vmatpush1.bf16.xpose.msra.mxu0 0
    %538 = vmatprep.subr.bf16.mxu0 0
    %539 = vmatpush1.bf16.xpose.msra.mxu0 0
    %540 = vmatprep.subr.bf16.mxu0 0
    %541 = vmatpush1.bf16.xpose.msra.mxu0 0
    %542 = vmatprep.subr.bf16.mxu0 0
    %543 = vmatpush1.bf16.xpose.msra.mxu0 0
    %544 = vmatprep.subr.bf16.mxu0 0
    %545 = vmatpush1.bf16.xpose.msra.mxu0 0
    %546 = vmatprep.subr.bf16.mxu0 0
    %547 = vmatpush1.bf16.xpose.msra.mxu0 0
    %548 = vmatprep.subr.bf16.mxu0 0
    %549 = vmatpush1.bf16.xpose.msra.mxu0 0
    %550 = vmatprep.subr.bf16.mxu0 0
    %551 = vmatpush1.bf16.xpose.msra.mxu0 0
    %552 = vmatprep.subr.bf16.mxu0 0
    %553 = vmatpush1.bf16.xpose.msra.mxu0 0
    %554 = vmatprep.mubr.bf16.mxu0 0
    %555 = vmatmul.mubr.bf16.gmra.mrb[0].mxu0 %v517
    %v556 = vpop.f32.mrb[0].mxu0
    %v557 = vadd.f32 0.0, %v556
    %v558 = vpop.f32.mrb[0].mxu0
    %v559 = vpop.f32.mrb[0].mxu0
    %v560 = vpop.f32.mrb[0].mxu0
    %561 = vdwg.mxu0
    %v563 = vsel %vm423, %v362, 0
    %v566 = vsel %vm423, %v390, 0
    %568 = vmatprep.subr.bf16.mxu0 0
    %569 = vmatpush1.bf16.xpose.msra.mxu0 %v566
    %570 = vmatprep.subr.bf16.mxu0 0
    %571 = vmatpush1.bf16.xpose.msra.mxu0 0
    %572 = vmatprep.subr.bf16.mxu0 0
    %573 = vmatpush1.bf16.xpose.msra.mxu0 0
    %574 = vmatprep.subr.bf16.mxu0 0
    %575 = vmatpush1.bf16.xpose.msra.mxu0 0
    %576 = vmatprep.subr.bf16.mxu0 0
    %577 = vmatpush1.bf16.xpose.msra.mxu0 0
    %578 = vmatprep.subr.bf16.mxu0 0
    %579 = vmatpush1.bf16.xpose.msra.mxu0 0
    %580 = vmatprep.subr.bf16.mxu0 0
    %581 = vmatpush1.bf16.xpose.msra.mxu0 0
    %582 = vmatprep.subr.bf16.mxu0 0
    %583 = vmatpush1.bf16.xpose.msra.mxu0 0
    %584 = vmatprep.subr.bf16.mxu0 0
    %585 = vmatpush1.bf16.xpose.msra.mxu0 0
    %586 = vmatprep.subr.bf16.mxu0 0
    %587 = vmatpush1.bf16.xpose.msra.mxu0 0
    %588 = vmatprep.subr.bf16.mxu0 0
    %589 = vmatpush1.bf16.xpose.msra.mxu0 0
    %590 = vmatprep.subr.bf16.mxu0 0
    %591 = vmatpush1.bf16.xpose.msra.mxu0 0
    %592 = vmatprep.subr.bf16.mxu0 0
    %593 = vmatpush1.bf16.xpose.msra.mxu0 0
    %594 = vmatprep.subr.bf16.mxu0 0
    %595 = vmatpush1.bf16.xpose.msra.mxu0 0
    %596 = vmatprep.subr.bf16.mxu0 0
    %597 = vmatpush1.bf16.xpose.msra.mxu0 0
    %598 = vmatprep.subr.bf16.mxu0 0
    %599 = vmatpush1.bf16.xpose.msra.mxu0 0
    %600 = vmatprep.mubr.bf16.mxu0 0
    %601 = vmatmul.mubr.bf16.gmra.mrb[0].mxu0 %v563
    %v602 = vpop.f32.mrb[0].mxu0
    %v603 = vadd.f32 0.0, %v602
    %v604 = vpop.f32.mrb[0].mxu0
    %v605 = vpop.f32.mrb[0].mxu0
    %v606 = vpop.f32.mrb[0].mxu0
    %607 = vdwg.mxu0
    %v609 = vsel %vm423, %v363, 0
    %v612 = vsel %vm423, %v391, 0
    %614 = vmatprep.subr.bf16.mxu0 0
    %615 = vmatpush1.bf16.xpose.msra.mxu0 %v612
    %616 = vmatprep.subr.bf16.mxu0 0
    %617 = vmatpush1.bf16.xpose.msra.mxu0 0
    %618 = vmatprep.subr.bf16.mxu0 0
    %619 = vmatpush1.bf16.xpose.msra.mxu0 0
    %620 = vmatprep.subr.bf16.mxu0 0
    %621 = vmatpush1.bf16.xpose.msra.mxu0 0
    %622 = vmatprep.subr.bf16.mxu0 0
    %623 = vmatpush1.bf16.xpose.msra.mxu0 0
    %624 = vmatprep.subr.bf16.mxu0 0
    %625 = vmatpush1.bf16.xpose.msra.mxu0 0
    %626 = vmatprep.subr.bf16.mxu0 0
    %627 = vmatpush1.bf16.xpose.msra.mxu0 0
    %628 = vmatprep.subr.bf16.mxu0 0
    %629 = vmatpush1.bf16.xpose.msra.mxu0 0
    %630 = vmatprep.subr.bf16.mxu0 0
    %631 = vmatpush1.bf16.xpose.msra.mxu0 0
    %632 = vmatprep.subr.bf16.mxu0 0
    %633 = vmatpush1.bf16.xpose.msra.mxu0 0
    %634 = vmatprep.subr.bf16.mxu0 0
    %635 = vmatpush1.bf16.xpose.msra.mxu0 0
    %636 = vmatprep.subr.bf16.mxu0 0
    %637 = vmatpush1.bf16.xpose.msra.mxu0 0
    %638 = vmatprep.subr.bf16.mxu0 0
    %639 = vmatpush1.bf16.xpose.msra.mxu0 0
    %640 = vmatprep.subr.bf16.mxu0 0
    %641 = vmatpush1.bf16.xpose.msra.mxu0 0
    %642 = vmatprep.subr.bf16.mxu0 0
    %643 = vmatpush1.bf16.xpose.msra.mxu0 0
    %644 = vmatprep.subr.bf16.mxu0 0
    %645 = vmatpush1.bf16.xpose.msra.mxu0 0
    %646 = vmatprep.mubr.bf16.mxu0 0
    %647 = vmatmul.mubr.bf16.gmra.mrb[0].mxu0 %v609
    %v648 = vpop.f32.mrb[0].mxu0
    %v649 = vadd.f32 0.0, %v648
    %v650 = vpop.f32.mrb[0].mxu0
    %v651 = vpop.f32.mrb[0].mxu0
    %v652 = vpop.f32.mrb[0].mxu0
    %653 = vdwg.mxu0
    %v655 = vsel %vm423, %v364, 0
    %v658 = vsel %vm423, %v392, 0
    %660 = vmatprep.subr.bf16.mxu0 0
    %661 = vmatpush1.bf16.xpose.msra.mxu0 %v658
    %662 = vmatprep.subr.bf16.mxu0 0
    %663 = vmatpush1.bf16.xpose.msra.mxu0 0
    %664 = vmatprep.subr.bf16.mxu0 0
    %665 = vmatpush1.bf16.xpose.msra.mxu0 0
    %666 = vmatprep.subr.bf16.mxu0 0
    %667 = vmatpush1.bf16.xpose.msra.mxu0 0
    %668 = vmatprep.subr.bf16.mxu0 0
    %669 = vmatpush1.bf16.xpose.msra.mxu0 0
    %670 = vmatprep.subr.bf16.mxu0 0
    %671 = vmatpush1.bf16.xpose.msra.mxu0 0
    %672 = vmatprep.subr.bf16.mxu0 0
    %673 = vmatpush1.bf16.xpose.msra.mxu0 0
    %674 = vmatprep.subr.bf16.mxu0 0
    %675 = vmatpush1.bf16.xpose.msra.mxu0 0
    %676 = vmatprep.subr.bf16.mxu0 0
    %677 = vmatpush1.bf16.xpose.msra.mxu0 0
    %678 = vmatprep.subr.bf16.mxu0 0
    %679 = vmatpush1.bf16.xpose.msra.mxu0 0
    %680 = vmatprep.subr.bf16.mxu0 0
    %681 = vmatpush1.bf16.xpose.msra.mxu0 0
    %682 = vmatprep.subr.bf16.mxu0 0
    %683 = vmatpush1.bf16.xpose.msra.mxu0 0
    %684 = vmatprep.subr.bf16.mxu0 0
    %685 = vmatpush1.bf16.xpose.msra.mxu0 0
    %686 = vmatprep.subr.bf16.mxu0 0
    %687 = vmatpush1.bf16.xpose.msra.mxu0 0
    %688 = vmatprep.subr.bf16.mxu0 0
    %689 = vmatpush1.bf16.xpose.msra.mxu0 0
    %690 = vmatprep.subr.bf16.mxu0 0
    %691 = vmatpush1.bf16.xpose.msra.mxu0 0
    %692 = vmatprep.mubr.bf16.mxu0 0
    %693 = vmatmul.mubr.bf16.gmra.mrb[0].mxu0 %v655
    %v694 = vpop.f32.mrb[0].mxu0
    %v695 = vadd.f32 0.0, %v694
    %v696 = vpop.f32.mrb[0].mxu0
    %v697 = vpop.f32.mrb[0].mxu0
    %v698 = vpop.f32.mrb[0].mxu0
    %699 = vdwg.mxu0
    %v701 = vsel %vm423, %v365, 0
    %v704 = vsel %vm423, %v393, 0
    %706 = vmatprep.subr.bf16.mxu0 0
    %707 = vmatpush1.bf16.xpose.msra.mxu0 %v704
    %708 = vmatprep.subr.bf16.mxu0 0
    %709 = vmatpush1.bf16.xpose.msra.mxu0 0
    %710 = vmatprep.subr.bf16.mxu0 0
    %711 = vmatpush1.bf16.xpose.msra.mxu0 0
    %712 = vmatprep.subr.bf16.mxu0 0
    %713 = vmatpush1.bf16.xpose.msra.mxu0 0
    %714 = vmatprep.subr.bf16.mxu0 0
    %715 = vmatpush1.bf16.xpose.msra.mxu0 0
    %716 = vmatprep.subr.bf16.mxu0 0
    %717 = vmatpush1.bf16.xpose.msra.mxu0 0
    %718 = vmatprep.subr.bf16.mxu0 0
    %719 = vmatpush1.bf16.xpose.msra.mxu0 0
    %720 = vmatprep.subr.bf16.mxu0 0
    %721 = vmatpush1.bf16.xpose.msra.mxu0 0
    %722 = vmatprep.subr.bf16.mxu0 0
    %723 = vmatpush1.bf16.xpose.msra.mxu0 0
    %724 = vmatprep.subr.bf16.mxu0 0
    %725 = vmatpush1.bf16.xpose.msra.mxu0 0
    %726 = vmatprep.subr.bf16.mxu0 0
    %727 = vmatpush1.bf16.xpose.msra.mxu0 0
    %728 = vmatprep.subr.bf16.mxu0 0
    %729 = vmatpush1.bf16.xpose.msra.mxu0 0
    %730 = vmatprep.subr.bf16.mxu0 0
    %731 = vmatpush1.bf16.xpose.msra.mxu0 0
    %732 = vmatprep.subr.bf16.mxu0 0
    %733 = vmatpush1.bf16.xpose.msra.mxu0 0
    %734 = vmatprep.subr.bf16.mxu0 0
    %735 = vmatpush1.bf16.xpose.msra.mxu0 0
    %736 = vmatprep.subr.bf16.mxu0 0
    %737 = vmatpush1.bf16.xpose.msra.mxu0 0
    %738 = vmatprep.mubr.bf16.mxu0 0
    %739 = vmatmul.mubr.bf16.gmra.mrb[0].mxu0 %v701
    %v740 = vpop.f32.mrb[0].mxu0
    %v741 = vadd.f32 0.0, %v740
    %v742 = vpop.f32.mrb[0].mxu0
    %v743 = vpop.f32.mrb[0].mxu0
    %v744 = vpop.f32.mrb[0].mxu0
    %745 = vdwg.mxu0
    %v747 = vsel %vm423, %v366, 0
    %v750 = vsel %vm423, %v394, 0
    %752 = vmatprep.subr.bf16.mxu0 0
    %753 = vmatpush1.bf16.xpose.msra.mxu0 %v750
    %754 = vmatprep.subr.bf16.mxu0 0
    %755 = vmatpush1.bf16.xpose.msra.mxu0 0
    %756 = vmatprep.subr.bf16.mxu0 0
    %757 = vmatpush1.bf16.xpose.msra.mxu0 0
    %758 = vmatprep.subr.bf16.mxu0 0
    %759 = vmatpush1.bf16.xpose.msra.mxu0 0
    %760 = vmatprep.subr.bf16.mxu0 0
    %761 = vmatpush1.bf16.xpose.msra.mxu0 0
    %762 = vmatprep.subr.bf16.mxu0 0
    %763 = vmatpush1.bf16.xpose.msra.mxu0 0
    %764 = vmatprep.subr.bf16.mxu0 0
    %765 = vmatpush1.bf16.xpose.msra.mxu0 0
    %766 = vmatprep.subr.bf16.mxu0 0
    %767 = vmatpush1.bf16.xpose.msra.mxu0 0
    %768 = vmatprep.subr.bf16.mxu0 0
    %769 = vmatpush1.bf16.xpose.msra.mxu0 0
    %770 = vmatprep.subr.bf16.mxu0 0
    %771 = vmatpush1.bf16.xpose.msra.mxu0 0
    %772 = vmatprep.subr.bf16.mxu0 0
    %773 = vmatpush1.bf16.xpose.msra.mxu0 0
    %774 = vmatprep.subr.bf16.mxu0 0
    %775 = vmatpush1.bf16.xpose.msra.mxu0 0
    %776 = vmatprep.subr.bf16.mxu0 0
    %777 = vmatpush1.bf16.xpose.msra.mxu0 0
    %778 = vmatprep.subr.bf16.mxu0 0
    %779 = vmatpush1.bf16.xpose.msra.mxu0 0
    %780 = vmatprep.subr.bf16.mxu0 0
    %781 = vmatpush1.bf16.xpose.msra.mxu0 0
    %782 = vmatprep.subr.bf16.mxu0 0
    %783 = vmatpush1.bf16.xpose.msra.mxu0 0
    %784 = vmatprep.mubr.bf16.mxu0 0
    %785 = vmatmul.mubr.bf16.gmra.mrb[0].mxu0 %v747
    %v786 = vpop.f32.mrb[0].mxu0
    %v787 = vadd.f32 0.0, %v786
    %v788 = vpop.f32.mrb[0].mxu0
    %v789 = vpop.f32.mrb[0].mxu0
    %v790 = vpop.f32.mrb[0].mxu0
    %791 = vdwg.mxu0
    %v792 = vsel %vm423, %v465, -inf
    %793 = vmax.xlane.f32.xlu0 %v792
    %v794 = vpop.xlane.xlu0 %793
    %v795 = vsel %vm423, %v511, -inf
    %796 = vmax.xlane.f32.xlu0 %v795
    %v797 = vpop.xlane.xlu0 %796
    %v798 = vsel %vm423, %v557, -inf
    %799 = vmax.xlane.f32.xlu0 %v798
    %v800 = vpop.xlane.xlu0 %799
    %v801 = vsel %vm423, %v603, -inf
    %802 = vmax.xlane.f32.xlu0 %v801
    %v803 = vpop.xlane.xlu0 %802
    %v804 = vsel %vm423, %v649, -inf
    %805 = vmax.xlane.f32.xlu0 %v804
    %v806 = vpop.xlane.xlu0 %805
    %v807 = vsel %vm423, %v695, -inf
    %808 = vmax.xlane.f32.xlu0 %v807
    %v809 = vpop.xlane.xlu0 %808
    %v810 = vsel %vm423, %v741, -inf
    %811 = vmax.xlane.f32.xlu0 %v810
    %v812 = vpop.xlane.xlu0 %811
    %v813 = vsel %vm423, %v787, -inf
    %814 = vmax.xlane.f32.xlu0 %v813
    %v815 = vpop.xlane.xlu0 %814
    %v816 = vsub.f32 %v465, %v794
    %v817 = vsub.f32 %v511, %v797
    %v818 = vsub.f32 %v557, %v800
    %v819 = vsub.f32 %v603, %v803
    %v820 = vsub.f32 %v649, %v806
    %v821 = vsub.f32 %v695, %v809
    %v822 = vsub.f32 %v741, %v812
    %v823 = vsub.f32 %v787, %v815
    %v824 = vmul.f32 %v816, 1.442695
    %v825 = vpow.pop %v824
    %v826 = vmul.f32 %v817, 1.442695
    %v827 = vpow.pop %v826
    %v828 = vmul.f32 %v818, 1.442695
    %v829 = vpow.pop %v828
    %v830 = vmul.f32 %v819, 1.442695
    %v831 = vpow.pop %v830
    %v832 = vmul.f32 %v820, 1.442695
    %v833 = vpow.pop %v832
    %v834 = vmul.f32 %v821, 1.442695
    %v835 = vpow.pop %v834
    %v836 = vmul.f32 %v822, 1.442695
    %v837 = vpow.pop %v836
    %v838 = vmul.f32 %v823, 1.442695
    %v839 = vpow.pop %v838
    %v840 = vsel %vm423, %v825, 0.0
    %841 = vadd.xlane.f32.xlu0 %v840
    %v842 = vpop.xlane.xlu0 %841
    %v843 = vsel %vm423, %v827, 0.0
    %844 = vadd.xlane.f32.xlu0 %v843
    %v845 = vpop.xlane.xlu0 %844
    %v846 = vsel %vm423, %v829, 0.0
    %847 = vadd.xlane.f32.xlu0 %v846
    %v848 = vpop.xlane.xlu0 %847
    %v849 = vsel %vm423, %v831, 0.0
    %850 = vadd.xlane.f32.xlu0 %v849
    %v851 = vpop.xlane.xlu0 %850
    %v852 = vsel %vm423, %v833, 0.0
    %853 = vadd.xlane.f32.xlu0 %v852
    %v854 = vpop.xlane.xlu0 %853
    %v855 = vsel %vm423, %v835, 0.0
    %856 = vadd.xlane.f32.xlu0 %v855
    %v857 = vpop.xlane.xlu0 %856
    %v858 = vsel %vm423, %v837, 0.0
    %859 = vadd.xlane.f32.xlu0 %v858
    %v860 = vpop.xlane.xlu0 %859
    %v861 = vsel %vm423, %v839, 0.0
    %862 = vadd.xlane.f32.xlu0 %v861
    %v863 = vpop.xlane.xlu0 %862
    %v864 = vrcp.pop %v842
    %v865 = vrcp.pop %v845
    %v866 = vrcp.pop %v848
    %v867 = vrcp.pop %v851
    %v868 = vrcp.pop %v854
    %v869 = vrcp.pop %v857
    %v870 = vrcp.pop %v860
    %v871 = vrcp.pop %v863
    %v872 = vmul.f32 %v825, %v864
    %v873 = vmul.f32 %v827, %v865
    %v874 = vmul.f32 %v829, %v866
    %v875 = vmul.f32 %v831, %v867
    %v876 = vmul.f32 %v833, %v868
    %v877 = vmul.f32 %v835, %v869
    %v878 = vmul.f32 %v837, %v870
    %v879 = vmul.f32 %v839, %v871
    %v880 = vpack.c.bf16 %v872, %v872
    %v881 = vpack.c.bf16 %v873, %v873
    %v882 = vpack.c.bf16 %v874, %v874
    %v883 = vpack.c.bf16 %v875, %v875
    %v884 = vpack.c.bf16 %v876, %v876
    %v885 = vpack.c.bf16 %v877, %v877
    %v886 = vpack.c.bf16 %v878, %v878
    %v887 = vpack.c.bf16 %v879, %v879
    %v889 = vsel %vm423, %v880, 0
    %vm891 = vcmask 1043456
    %v893 = vsel %vm891, %v415, 0
    %895 = vmatprep.subr.bf16.mxu0 0
    %896 = vmatpush1.bf16.msra.mxu0 %v893
    %897 = vmatprep.subr.bf16.mxu0 0
    %898 = vmatpush1.bf16.msra.mxu0 0
    %899 = vmatprep.subr.bf16.mxu0 0
    %900 = vmatpush1.bf16.msra.mxu0 0
    %901 = vmatprep.subr.bf16.mxu0 0
    %902 = vmatpush1.bf16.msra.mxu0 0
    %903 = vmatprep.subr.bf16.mxu0 0
    %904 = vmatpush1.bf16.msra.mxu0 0
    %905 = vmatprep.subr.bf16.mxu0 0
    %906 = vmatpush1.bf16.msra.mxu0 0
    %907 = vmatprep.subr.bf16.mxu0 0
    %908 = vmatpush1.bf16.msra.mxu0 0
    %909 = vmatprep.subr.bf16.mxu0 0
    %910 = vmatpush1.bf16.msra.mxu0 0
    %911 = vmatprep.subr.bf16.mxu0 0
    %912 = vmatpush1.bf16.msra.mxu0 0
    %913 = vmatprep.subr.bf16.mxu0 0
    %914 = vmatpush1.bf16.msra.mxu0 0
    %915 = vmatprep.subr.bf16.mxu0 0
    %916 = vmatpush1.bf16.msra.mxu0 0
    %917 = vmatprep.subr.bf16.mxu0 0
    %918 = vmatpush1.bf16.msra.mxu0 0
    %919 = vmatprep.subr.bf16.mxu0 0
    %920 = vmatpush1.bf16.msra.mxu0 0
    %921 = vmatprep.subr.bf16.mxu0 0
    %922 = vmatpush1.bf16.msra.mxu0 0
    %923 = vmatprep.subr.bf16.mxu0 0
    %924 = vmatpush1.bf16.msra.mxu0 0
    %925 = vmatprep.subr.bf16.mxu0 0
    %926 = vmatpush1.bf16.msra.mxu0 0
    %927 = vmatprep.mubr.bf16.mxu0 0
    %928 = vmatmul.mubr.bf16.gmra.mrb[0].mxu0 %v889
    %v929 = vpop.f32.mrb[0].mxu0
    %v930 = vadd.f32 0.0, %v929
    %v931 = vpop.f32.mrb[0].mxu0
    %v932 = vpop.f32.mrb[0].mxu0
    %v933 = vpop.f32.mrb[0].mxu0
    %934 = vdwg.mxu0
    %v936 = vsel %vm423, %v881, 0
    %v939 = vsel %vm891, %v416, 0
    %941 = vmatprep.subr.bf16.mxu0 0
    %942 = vmatpush1.bf16.msra.mxu0 %v939
    %943 = vmatprep.subr.bf16.mxu0 0
    %944 = vmatpush1.bf16.msra.mxu0 0
    %945 = vmatprep.subr.bf16.mxu0 0
    %946 = vmatpush1.bf16.msra.mxu0 0
    %947 = vmatprep.subr.bf16.mxu0 0
    %948 = vmatpush1.bf16.msra.mxu0 0
    %949 = vmatprep.subr.bf16.mxu0 0
    %950 = vmatpush1.bf16.msra.mxu0 0
    %951 = vmatprep.subr.bf16.mxu0 0
    %952 = vmatpush1.bf16.msra.mxu0 0
    %953 = vmatprep.subr.bf16.mxu0 0
    %954 = vmatpush1.bf16.msra.mxu0 0
    %955 = vmatprep.subr.bf16.mxu0 0
    %956 = vmatpush1.bf16.msra.mxu0 0
    %957 = vmatprep.subr.bf16.mxu0 0
    %958 = vmatpush1.bf16.msra.mxu0 0
    %959 = vmatprep.subr.bf16.mxu0 0
    %960 = vmatpush1.bf16.msra.mxu0 0
    %961 = vmatprep.subr.bf16.mxu0 0
    %962 = vmatpush1.bf16.msra.mxu0 0
    %963 = vmatprep.subr.bf16.mxu0 0
    %964 = vmatpush1.bf16.msra.mxu0 0
    %965 = vmatprep.subr.bf16.mxu0 0
    %966 = vmatpush1.bf16.msra.mxu0 0
    %967 = vmatprep.subr.bf16.mxu0 0
    %968 = vmatpush1.bf16.msra.mxu0 0
    %969 = vmatprep.subr.bf16.mxu0 0
    %970 = vmatpush1.bf16.msra.mxu0 0
    %971 = vmatprep.subr.bf16.mxu0 0
    %972 = vmatpush1.bf16.msra.mxu0 0
    %973 = vmatprep.mubr.bf16.mxu0 0
    %974 = vmatmul.mubr.bf16.gmra.mrb[0].mxu0 %v936
    %v975 = vpop.f32.mrb[0].mxu0
    %v976 = vadd.f32 0.0, %v975
    %v977 = vpop.f32.mrb[0].mxu0
    %v978 = vpop.f32.mrb[0].mxu0
    %v979 = vpop.f32.mrb[0].mxu0
    %980 = vdwg.mxu0
    %v982 = vsel %vm423, %v882, 0
    %v985 = vsel %vm891, %v417, 0
    %987 = vmatprep.subr.bf16.mxu0 0
    %988 = vmatpush1.bf16.msra.mxu0 %v985
    %989 = vmatprep.subr.bf16.mxu0 0
    %990 = vmatpush1.bf16.msra.mxu0 0
    %991 = vmatprep.subr.bf16.mxu0 0
    %992 = vmatpush1.bf16.msra.mxu0 0
    %993 = vmatprep.subr.bf16.mxu0 0
    %994 = vmatpush1.bf16.msra.mxu0 0
    %995 = vmatprep.subr.bf16.mxu0 0
    %996 = vmatpush1.bf16.msra.mxu0 0
    %997 = vmatprep.subr.bf16.mxu0 0
    %998 = vmatpush1.bf16.msra.mxu0 0
    %999 = vmatprep.subr.bf16.mxu0 0
    %1000 = vmatpush1.bf16.msra.mxu0 0
    %1001 = vmatprep.subr.bf16.mxu0 0
    %1002 = vmatpush1.bf16.msra.mxu0 0
    %1003 = vmatprep.subr.bf16.mxu0 0
    %1004 = vmatpush1.bf16.msra.mxu0 0
    %1005 = vmatprep.subr.bf16.mxu0 0
    %1006 = vmatpush1.bf16.msra.mxu0 0
    %1007 = vmatprep.subr.bf16.mxu0 0
    %1008 = vmatpush1.bf16.msra.mxu0 0
    %1009 = vmatprep.subr.bf16.mxu0 0
    %1010 = vmatpush1.bf16.msra.mxu0 0
    %1011 = vmatprep.subr.bf16.mxu0 0
    %1012 = vmatpush1.bf16.msra.mxu0 0
    %1013 = vmatprep.subr.bf16.mxu0 0
    %1014 = vmatpush1.bf16.msra.mxu0 0
    %1015 = vmatprep.subr.bf16.mxu0 0
    %1016 = vmatpush1.bf16.msra.mxu0 0
    %1017 = vmatprep.subr.bf16.mxu0 0
    %1018 = vmatpush1.bf16.msra.mxu0 0
    %1019 = vmatprep.mubr.bf16.mxu0 0
    %1020 = vmatmul.mubr.bf16.gmra.mrb[0].mxu0 %v982
    %v1021 = vpop.f32.mrb[0].mxu0
    %v1022 = vadd.f32 0.0, %v1021
    %v1023 = vpop.f32.mrb[0].mxu0
    %v1024 = vpop.f32.mrb[0].mxu0
    %v1025 = vpop.f32.mrb[0].mxu0
    %1026 = vdwg.mxu0
    %v1028 = vsel %vm423, %v883, 0
    %v1031 = vsel %vm891, %v418, 0
    %1033 = vmatprep.subr.bf16.mxu0 0
    %1034 = vmatpush1.bf16.msra.mxu0 %v1031
    %1035 = vmatprep.subr.bf16.mxu0 0
    %1036 = vmatpush1.bf16.msra.mxu0 0
    %1037 = vmatprep.subr.bf16.mxu0 0
    %1038 = vmatpush1.bf16.msra.mxu0 0
    %1039 = vmatprep.subr.bf16.mxu0 0
    %1040 = vmatpush1.bf16.msra.mxu0 0
    %1041 = vmatprep.subr.bf16.mxu0 0
    %1042 = vmatpush1.bf16.msra.mxu0 0
    %1043 = vmatprep.subr.bf16.mxu0 0
    %1044 = vmatpush1.bf16.msra.mxu0 0
    %1045 = vmatprep.subr.bf16.mxu0 0
    %1046 = vmatpush1.bf16.msra.mxu0 0
    %1047 = vmatprep.subr.bf16.mxu0 0
    %1048 = vmatpush1.bf16.msra.mxu0 0
    %1049 = vmatprep.subr.bf16.mxu0 0
    %1050 = vmatpush1.bf16.msra.mxu0 0
    %1051 = vmatprep.subr.bf16.mxu0 0
    %1052 = vmatpush1.bf16.msra.mxu0 0
    %1053 = vmatprep.subr.bf16.mxu0 0
    %1054 = vmatpush1.bf16.msra.mxu0 0
    %1055 = vmatprep.subr.bf16.mxu0 0
    %1056 = vmatpush1.bf16.msra.mxu0 0
    %1057 = vmatprep.subr.bf16.mxu0 0
    %1058 = vmatpush1.bf16.msra.mxu0 0
    %1059 = vmatprep.subr.bf16.mxu0 0
    %1060 = vmatpush1.bf16.msra.mxu0 0
    %1061 = vmatprep.subr.bf16.mxu0 0
    %1062 = vmatpush1.bf16.msra.mxu0 0
    %1063 = vmatprep.subr.bf16.mxu0 0
    %1064 = vmatpush1.bf16.msra.mxu0 0
    %1065 = vmatprep.mubr.bf16.mxu0 0
    %1066 = vmatmul.mubr.bf16.gmra.mrb[0].mxu0 %v1028
    %v1067 = vpop.f32.mrb[0].mxu0
    %v1068 = vadd.f32 0.0, %v1067
    %v1069 = vpop.f32.mrb[0].mxu0
    %v1070 = vpop.f32.mrb[0].mxu0
    %v1071 = vpop.f32.mrb[0].mxu0
    %1072 = vdwg.mxu0
    %v1074 = vsel %vm423, %v884, 0
    %v1077 = vsel %vm891, %v419, 0
    %1079 = vmatprep.subr.bf16.mxu0 0
    %1080 = vmatpush1.bf16.msra.mxu0 %v1077
    %1081 = vmatprep.subr.bf16.mxu0 0
    %1082 = vmatpush1.bf16.msra.mxu0 0
    %1083 = vmatprep.subr.bf16.mxu0 0
    %1084 = vmatpush1.bf16.msra.mxu0 0
    %1085 = vmatprep.subr.bf16.mxu0 0
    %1086 = vmatpush1.bf16.msra.mxu0 0
    %1087 = vmatprep.subr.bf16.mxu0 0
    %1088 = vmatpush1.bf16.msra.mxu0 0
    %1089 = vmatprep.subr.bf16.mxu0 0
    %1090 = vmatpush1.bf16.msra.mxu0 0
    %1091 = vmatprep.subr.bf16.mxu0 0
    %1092 = vmatpush1.bf16.msra.mxu0 0
    %1093 = vmatprep.subr.bf16.mxu0 0
    %1094 = vmatpush1.bf16.msra.mxu0 0
    %1095 = vmatprep.subr.bf16.mxu0 0
    %1096 = vmatpush1.bf16.msra.mxu0 0
    %1097 = vmatprep.subr.bf16.mxu0 0
    %1098 = vmatpush1.bf16.msra.mxu0 0
    %1099 = vmatprep.subr.bf16.mxu0 0
    %1100 = vmatpush1.bf16.msra.mxu0 0
    %1101 = vmatprep.subr.bf16.mxu0 0
    %1102 = vmatpush1.bf16.msra.mxu0 0
    %1103 = vmatprep.subr.bf16.mxu0 0
    %1104 = vmatpush1.bf16.msra.mxu0 0
    %1105 = vmatprep.subr.bf16.mxu0 0
    %1106 = vmatpush1.bf16.msra.mxu0 0
    %1107 = vmatprep.subr.bf16.mxu0 0
    %1108 = vmatpush1.bf16.msra.mxu0 0
    %1109 = vmatprep.subr.bf16.mxu0 0
    %1110 = vmatpush1.bf16.msra.mxu0 0
    %1111 = vmatprep.mubr.bf16.mxu0 0
    %1112 = vmatmul.mubr.bf16.gmra.mrb[0].mxu0 %v1074
    %v1113 = vpop.f32.mrb[0].mxu0
    %v1114 = vadd.f32 0.0, %v1113
    %v1115 = vpop.f32.mrb[0].mxu0
    %v1116 = vpop.f32.mrb[0].mxu0
    %v1117 = vpop.f32.mrb[0].mxu0
    %1118 = vdwg.mxu0
    %v1120 = vsel %vm423, %v885, 0
    %v1123 = vsel %vm891, %v420, 0
    %1125 = vmatprep.subr.bf16.mxu0 0
    %1126 = vmatpush1.bf16.msra.mxu0 %v1123
    %1127 = vmatprep.subr.bf16.mxu0 0
    %1128 = vmatpush1.bf16.msra.mxu0 0
    %1129 = vmatprep.subr.bf16.mxu0 0
    %1130 = vmatpush1.bf16.msra.mxu0 0
    %1131 = vmatprep.subr.bf16.mxu0 0
    %1132 = vmatpush1.bf16.msra.mxu0 0
    %1133 = vmatprep.subr.bf16.mxu0 0
    %1134 = vmatpush1.bf16.msra.mxu0 0
    %1135 = vmatprep.subr.bf16.mxu0 0
    %1136 = vmatpush1.bf16.msra.mxu0 0
    %1137 = vmatprep.subr.bf16.mxu0 0
    %1138 = vmatpush1.bf16.msra.mxu0 0
    %1139 = vmatprep.subr.bf16.mxu0 0
    %1140 = vmatpush1.bf16.msra.mxu0 0
    %1141 = vmatprep.subr.bf16.mxu0 0
    %1142 = vmatpush1.bf16.msra.mxu0 0
    %1143 = vmatprep.subr.bf16.mxu0 0
    %1144 = vmatpush1.bf16.msra.mxu0 0
    %1145 = vmatprep.subr.bf16.mxu0 0
    %1146 = vmatpush1.bf16.msra.mxu0 0
    %1147 = vmatprep.subr.bf16.mxu0 0
    %1148 = vmatpush1.bf16.msra.mxu0 0
    %1149 = vmatprep.subr.bf16.mxu0 0
    %1150 = vmatpush1.bf16.msra.mxu0 0
    %1151 = vmatprep.subr.bf16.mxu0 0
    %1152 = vmatpush1.bf16.msra.mxu0 0
    %1153 = vmatprep.subr.bf16.mxu0 0
    %1154 = vmatpush1.bf16.msra.mxu0 0
    %1155 = vmatprep.subr.bf16.mxu0 0
    %1156 = vmatpush1.bf16.msra.mxu0 0
    %1157 = vmatprep.mubr.bf16.mxu0 0
    %1158 = vmatmul.mubr.bf16.gmra.mrb[0].mxu0 %v1120
    %v1159 = vpop.f32.mrb[0].mxu0
    %v1160 = vadd.f32 0.0, %v1159
    %v1161 = vpop.f32.mrb[0].mxu0
    %v1162 = vpop.f32.mrb[0].mxu0
    %v1163 = vpop.f32.mrb[0].mxu0
    %1164 = vdwg.mxu0
    %v1166 = vsel %vm423, %v886, 0
    %v1169 = vsel %vm891, %v421, 0
    %1171 = vmatprep.subr.bf16.mxu0 0
    %1172 = vmatpush1.bf16.msra.mxu0 %v1169
    %1173 = vmatprep.subr.bf16.mxu0 0
    %1174 = vmatpush1.bf16.msra.mxu0 0
    %1175 = vmatprep.subr.bf16.mxu0 0
    %1176 = vmatpush1.bf16.msra.mxu0 0
    %1177 = vmatprep.subr.bf16.mxu0 0
    %1178 = vmatpush1.bf16.msra.mxu0 0
    %1179 = vmatprep.subr.bf16.mxu0 0
    %1180 = vmatpush1.bf16.msra.mxu0 0
    %1181 = vmatprep.subr.bf16.mxu0 0
    %1182 = vmatpush1.bf16.msra.mxu0 0
    %1183 = vmatprep.subr.bf16.mxu0 0
    %1184 = vmatpush1.bf16.msra.mxu0 0
    %1185 = vmatprep.subr.bf16.mxu0 0
    %1186 = vmatpush1.bf16.msra.mxu0 0
    %1187 = vmatprep.subr.bf16.mxu0 0
    %1188 = vmatpush1.bf16.msra.mxu0 0
    %1189 = vmatprep.subr.bf16.mxu0 0
    %1190 = vmatpush1.bf16.msra.mxu0 0
    %1191 = vmatprep.subr.bf16.mxu0 0
    %1192 = vmatpush1.bf16.msra.mxu0 0
    %1193 = vmatprep.subr.bf16.mxu0 0
    %1194 = vmatpush1.bf16.msra.mxu0 0
    %1195 = vmatprep.subr.bf16.mxu0 0
    %1196 = vmatpush1.bf16.msra.mxu0 0
    %1197 = vmatprep.subr.bf16.mxu0 0
    %1198 = vmatpush1.bf16.msra.mxu0 0
    %1199 = vmatprep.subr.bf16.mxu0 0
    %1200 = vmatpush1.bf16.msra.mxu0 0
    %1201 = vmatprep.subr.bf16.mxu0 0
    %1202 = vmatpush1.bf16.msra.mxu0 0
    %1203 = vmatprep.mubr.bf16.mxu0 0
    %1204 = vmatmul.mubr.bf16.gmra.mrb[0].mxu0 %v1166
    %v1205 = vpop.f32.mrb[0].mxu0
    %v1206 = vadd.f32 0.0, %v1205
    %v1207 = vpop.f32.mrb[0].mxu0
    %v1208 = vpop.f32.mrb[0].mxu0
    %v1209 = vpop.f32.mrb[0].mxu0
    %1210 = vdwg.mxu0
    %v1212 = vsel %vm423, %v887, 0
    %v1215 = vsel %vm891, %v422, 0
    %1217 = vmatprep.subr.bf16.mxu0 0
    %1218 = vmatpush1.bf16.msra.mxu0 %v1215
    %1219 = vmatprep.subr.bf16.mxu0 0
    %1220 = vmatpush1.bf16.msra.mxu0 0
    %1221 = vmatprep.subr.bf16.mxu0 0
    %1222 = vmatpush1.bf16.msra.mxu0 0
    %1223 = vmatprep.subr.bf16.mxu0 0
    %1224 = vmatpush1.bf16.msra.mxu0 0
    %1225 = vmatprep.subr.bf16.mxu0 0
    %1226 = vmatpush1.bf16.msra.mxu0 0
    %1227 = vmatprep.subr.bf16.mxu0 0
    %1228 = vmatpush1.bf16.msra.mxu0 0
    %1229 = vmatprep.subr.bf16.mxu0 0
    %1230 = vmatpush1.bf16.msra.mxu0 0
    %1231 = vmatprep.subr.bf16.mxu0 0
    %1232 = vmatpush1.bf16.msra.mxu0 0
    %1233 = vmatprep.subr.bf16.mxu0 0
    %1234 = vmatpush1.bf16.msra.mxu0 0
    %1235 = vmatprep.subr.bf16.mxu0 0
    %1236 = vmatpush1.bf16.msra.mxu0 0
    %1237 = vmatprep.subr.bf16.mxu0 0
    %1238 = vmatpush1.bf16.msra.mxu0 0
    %1239 = vmatprep.subr.bf16.mxu0 0
    %1240 = vmatpush1.bf16.msra.mxu0 0
    %1241 = vmatprep.subr.bf16.mxu0 0
    %1242 = vmatpush1.bf16.msra.mxu0 0
    %1243 = vmatprep.subr.bf16.mxu0 0
    %1244 = vmatpush1.bf16.msra.mxu0 0
    %1245 = vmatprep.subr.bf16.mxu0 0
    %1246 = vmatpush1.bf16.msra.mxu0 0
    %1247 = vmatprep.subr.bf16.mxu0 0
    %1248 = vmatpush1.bf16.msra.mxu0 0
    %1249 = vmatprep.mubr.bf16.mxu0 0
    %1250 = vmatmul.mubr.bf16.gmra.mrb[0].mxu0 %v1212
    %v1251 = vpop.f32.mrb[0].mxu0
    %v1252 = vadd.f32 0.0, %v1251
    %v1253 = vpop.f32.mrb[0].mxu0
    %v1254 = vpop.f32.mrb[0].mxu0
    %v1255 = vpop.f32.mrb[0].mxu0
    %1256 = vdwg.mxu0
    %1259 = vrot.lane.b32.xlu0 %v1022, 8
    %v1260 = vpop.permute.xlu0 %1259
    %1261 = vrot.lane.b32.xlu0 %v1068, 8
    %v1262 = vpop.permute.xlu0 %1261
    %1267 = vrot.lane.b32.xlu0 %v1114, 16
    %v1268 = vpop.permute.xlu0 %1267
    %1269 = vrot.lane.b32.xlu0 %v1160, 16
    %v1270 = vpop.permute.xlu0 %1269
    %1275 = vrot.lane.b32.xlu0 %v1206, 24
    %v1276 = vpop.permute.xlu0 %1275
    %1277 = vrot.lane.b32.xlu0 %v1252, 24
    %v1278 = vpop.permute.xlu0 %1277
    %v1281 = vsel %vm423, %v930, %v1260
    %v1282 = vsel %vm423, %v976, %v1262
    %vm1283 = vcmask 130048
    %v1284 = vsel %vm1283, %v1281, %v1268
    %v1285 = vsel %vm1283, %v1282, %v1270
    %vm1286 = vcmask 195584
    %v1287 = vsel %vm1286, %v1284, %v1276
    %v1288 = vsel %vm1286, %v1285, %v1278
    %v1289 = vpack.c.bf16 %v1288, %v1287
    %v1290 = vld [vmem:[#allocation11] sm:$0xf]
    %v1291 = vld [vmem:[#allocation11 + $0x4] sm:$0xf]
    %v1292 = vld [vmem:[#allocation11 + $0x8] sm:$0xf]
    %v1293 = vld [vmem:[#allocation11 + $0xc] sm:$0xf]
    %v1294 = vld [vmem:[%s10] sm:$0x1]
    %v1296 = vlaneseq
    %v1297 = vshrl.u32 %v1296, 7
    %v1298 = vsub.s32 0, %v1297
    %v1299 = vrot.slane %v1294, %v1298
    %v1305 = vunpack.c.l.b16 %v1290
    %v1306 = vunpack.c.l.b16 %v1291
    %v1307 = vunpack.c.l.b16 %v1292
    %v1308 = vunpack.c.l.b16 %v1293
    %v1309 = vpack.c.b16 %v1306, %v1305
    %v1310 = vpack.c.b16 %v1308, %v1307
    %v1314 = vsel %vm148, %v1289, 0
    %1316 = vmatprep.subr.bf16.mxu0 0
    %1317 = vmatpush1.bf16.msra.mxu0 %v1309
    %1318 = vmatprep.subr.bf16.mxu0 0
    %1319 = vmatpush1.bf16.msra.mxu0 %v1310
    %1320 = vmatprep.subr.bf16.mxu0 0
    %1321 = vmatpush1.bf16.msra.mxu0 0
    %1322 = vmatprep.subr.bf16.mxu0 0
    %1323 = vmatpush1.bf16.msra.mxu0 0
    %1324 = vmatprep.subr.bf16.mxu0 0
    %1325 = vmatpush1.bf16.msra.mxu0 0
    %1326 = vmatprep.subr.bf16.mxu0 0
    %1327 = vmatpush1.bf16.msra.mxu0 0
    %1328 = vmatprep.subr.bf16.mxu0 0
    %1329 = vmatpush1.bf16.msra.mxu0 0
    %1330 = vmatprep.subr.bf16.mxu0 0
    %1331 = vmatpush1.bf16.msra.mxu0 0
    %1332 = vmatprep.subr.bf16.mxu0 0
    %1333 = vmatpush1.bf16.msra.mxu0 0
    %1334 = vmatprep.subr.bf16.mxu0 0
    %1335 = vmatpush1.bf16.msra.mxu0 0
    %1336 = vmatprep.subr.bf16.mxu0 0
    %1337 = vmatpush1.bf16.msra.mxu0 0
    %1338 = vmatprep.subr.bf16.mxu0 0
    %1339 = vmatpush1.bf16.msra.mxu0 0
    %1340 = vmatprep.subr.bf16.mxu0 0
    %1341 = vmatpush1.bf16.msra.mxu0 0
    %1342 = vmatprep.subr.bf16.mxu0 0
    %1343 = vmatpush1.bf16.msra.mxu0 0
    %1344 = vmatprep.subr.bf16.mxu0 0
    %1345 = vmatpush1.bf16.msra.mxu0 0
    %1346 = vmatprep.subr.bf16.mxu0 0
    %1347 = vmatpush1.bf16.msra.mxu0 0
    %1348 = vmatprep.mubr.bf16.mxu0 0
    %1349 = vmatmul.mubr.bf16.gmra.mrb[0].mxu0 %v1314
    %v1350 = vpop.f32.mrb[0].mxu0
    %v1351 = vadd.f32 %v1299, %v1350
    %v1352 = vpop.f32.mrb[0].mxu0
    %v1353 = vpop.f32.mrb[0].mxu0
    %v1354 = vadd.f32 %v1299, %v1353
    %v1355 = vpop.f32.mrb[0].mxu0
    %1356 = vdwg.mxu0
    %v1357 = vmax.f32 %v1351, 0.0
    %v1358 = vmax.f32 %v1354, 0.0
    %1359 = vst.msk [vmem:[#allocation13] sm:$0xff] %vm148, %v1357
    %1360 = vst.msk [vmem:[#allocation13 + $0x8] sm:$0xff] %vm148, %v1358
    // Predicated region
    $region70: #{tpu_custom_call.1} parent=1 // pred_check
      _
    $region71: #{tpu_custom_call.1} parent=1 // pred_check_branch
      %1362 = sbr.rel (0) target = $region73
    $region72: #{tpu_custom_call.1} parent=1 // pred_region
      %s1364 = ssub.s32 256, 256
      %1365 = vsyncadd [#allocation4], %s1364
      %s1366 = sshll.u32 [#allocation13], 4
      %s1367 = int_to_ptr.vmem [resolvable:$true] %s1366
      %1372 = dma.vmem_to_hbm [thread:$0]  %s1367, 256, %s11, [#allocation4], 128, 128, 8
    $region73: #{tpu_custom_call.1} parent=1 // pred_fallthru
      _
    // Predicated region
    $region74: #{tpu_custom_call.1} parent=1 // pred_check
      _
    $region75: #{tpu_custom_call.1} parent=1 // pred_check_branch
      %1374 = sbr.rel (0) target = $region77
    $region76: #{tpu_custom_call.1} parent=1 // pred_region
      %1375 = dma.done [#allocation4], 256
    $region77: #{tpu_custom_call.1} parent=1 // pred_fallthru
      _
    %1376 = vsyncpa [#allocation3], 1
    %1377 = vsyncpa [#allocation6], 1
    %1378 = vsyncpa [#allocation9], 1
    %1379 = vsyncpa [#allocation12], 1
    %1380 = vsyncpa [#allocation4], 1

</llo_original>
